<compile_context>
chip_gen: v5e
topology: v5e:2x2
jax: 0.10.0
libtpu: 0.0.40
codegen_flags: <defaults>
</compile_context>

<pallas_src>
import functools

import jax
import jax.numpy as jnp
from jax.experimental import pallas as pl
from jax.experimental.pallas import tpu as pltpu


def _encoder_layer_kernel(
    xq_ref, xkv_ref,
    wq_ref, bq_ref, wk_ref, bk_ref, wv_ref, bv_ref, wo_ref, bo_ref,
    g1_ref, be1_ref, w1_ref, b1_ref, w2_ref, b2_ref, g2_ref, be2_ref,
    out_ref, lres_ref,
    k_scratch, v_scratch, ao_scratch=None,
    *, num_heads, head_dim, eps, use_batched_heads, exp_dtype,
):
    Tq, C = xq_ref.shape
    T = xkv_ref.shape[0]
    H, Dh = num_heads, head_dim
    bf16 = jnp.bfloat16
    f32 = jnp.float32

    # ---- K/V projection: once per batch element (query-tile index 0), kept resident in
    #      bf16 VMEM scratch across all query tiles (t axis is "arbitrary"). ----
    @pl.when(pl.program_id(1) == 0)
    def _():
        xkv = xkv_ref[...]                                               # (T, C) bf16
        k = jnp.dot(xkv, wk_ref[...], preferred_element_type=f32) + bk_ref[...]
        v = jnp.dot(xkv, wv_ref[...], preferred_element_type=f32) + bv_ref[...]
        if use_batched_heads:
            # cast BEFORE the lane-regrouping einshape: half the vregs moved on the XLU.
            k_scratch[...] = pltpu.einshape("t(hd)->htd", k.astype(bf16), h=H, d=Dh)
            v_scratch[...] = pltpu.einshape("t(hd)->htd", v.astype(bf16), h=H, d=Dh)
        else:
            k_scratch[...] = k.astype(bf16)                              # (T, C)
            v_scratch[...] = v.astype(bf16)

    # ---- Query tile: projection (scale pre-folded into wq/bq on the host). ----
    xq = xq_ref[...]                                                     # (Tq, C) f32
    q = jnp.dot(xq.astype(bf16), wq_ref[...], preferred_element_type=f32) + bq_ref[...]

    if use_batched_heads:
        qh = pltpu.einshape("t(hd)->htd", q.astype(bf16), h=H, d=Dh)     # (H, Tq, Dh)
        s = jnp.einsum("htd,hsd->hts", qh, k_scratch[...],
                       preferred_element_type=f32)                       # (H, Tq, T) f32
        s = s - jnp.max(s, axis=-1, keepdims=True)
        p = jnp.exp(s.astype(exp_dtype))                                 # bf16 EUP on v6e/v7x
        inv = pl.reciprocal(jnp.sum(p.astype(f32), axis=-1, keepdims=True),
                            approx=True)                                 # (H, Tq, 1) f32
        o = jnp.einsum("hts,hsd->htd", p.astype(bf16), v_scratch[...],
                       preferred_element_type=f32)                       # (H, Tq, Dh) f32
        o = o * inv                                                      # denom folded into Dh-wide output
        ao = pltpu.einshape("htd->t(hd)", o.astype(bf16))                # (Tq, C) bf16
    else:
        # Fallback: per-head lane slices, head outputs written straight into a preallocated
        # (Tq, C) VMEM slab (no concatenate / extra copies).
        for h in range(H):
            sl = slice(h * Dh, (h + 1) * Dh)
            qh = q[:, sl].astype(bf16)
            kh = k_scratch[:, sl]
            vh = v_scratch[:, sl]
            s = jnp.dot(qh, kh.T, preferred_element_type=f32)
            s = s - jnp.max(s, axis=-1, keepdims=True)
            pm = jnp.exp(s.astype(exp_dtype))
            inv = pl.reciprocal(jnp.sum(pm.astype(f32), axis=-1, keepdims=True), approx=True)
            oh = jnp.dot(pm.astype(bf16), vh, preferred_element_type=f32) * inv
            ao_scratch[:, sl] = oh.astype(bf16)
        ao = ao_scratch[...]

    attn = jnp.dot(ao, wo_ref[...], preferred_element_type=f32) + bo_ref[...]   # (Tq, C)

    # residual + self_attn_layer_norm (f32)
    x1 = xq + attn
    mu1 = jnp.mean(x1, axis=-1, keepdims=True)
    xc1 = x1 - mu1
    var1 = jnp.mean(xc1 * xc1, axis=-1, keepdims=True)
    x1n = xc1 * jax.lax.rsqrt(var1 + eps) * g1_ref[...] + be1_ref[...]

    # FFN: relu(fc1) -> fc2, bf16 MXU matmuls with f32 accumulation
    h1 = jnp.dot(x1n.astype(bf16), w1_ref[...], preferred_element_type=f32) + b1_ref[...]
    h1 = jnp.maximum(h1, 0.0)
    ff = jnp.dot(h1.astype(bf16), w2_ref[...], preferred_element_type=f32) + b2_ref[...]
    lres_ref[...] = ff.astype(lres_ref.dtype)          # layer_result (pre-residual / pre-LN)

    # residual + final_layer_norm
    x2 = x1n + ff
    mu2 = jnp.mean(x2, axis=-1, keepdims=True)
    xc2 = x2 - mu2
    var2 = jnp.mean(xc2 * xc2, axis=-1, keepdims=True)
    out = xc2 * jax.lax.rsqrt(var2 + eps) * g2_ref[...] + be2_ref[...]
    out_ref[...] = out.astype(out_ref.dtype)


def _device_kind():
    try:
        return jax.devices()[0].device_kind.lower()
    except Exception:
        return ""


def _softmax_exp_dtype():
    # bf16 EUP exists on v6e / v7x only; keep f32 on v5e and older (or when unknown).
    kind = _device_kind()
    if "v6" in kind or "v7" in kind:
        return jnp.bfloat16
    return jnp.float32


def _vmem_capacity_bytes():
    try:
        cap = int(pltpu.get_tpu_info().vmem_capacity_bytes)
        if cap > 0:
            return cap
    except Exception:
        pass
    kind = _device_kind()
    if "v7" in kind:
        return 64 << 20
    return 128 << 20                       # v5e / v6e physical VMEM


def _vmem_plan(T, C, F, H, capacity, single_buffer_consts, q_tile=None):
    """Pick the query-tile size and vmem_limit_bytes from a resident-bytes estimate."""
    bf2, f4 = 2, 4
    wbuf = 1 if single_buffer_consts else 2
    weights = wbuf * bf2 * (4 * C * C + 2 * C * F)      # bf16 projection / FFN weights
    vectors = wbuf * f4 * (8 * C + 2 * F)               # f32 biases + LN params (over-est)
    kv_scr = 2 * bf2 * T * C                            # persistent K/V scratch (single copy)
    xkv_in = 2 * bf2 * T * C                            # full-seq bf16 input (2 pipeline bufs)

    def est(tq):
        xq_in = 2 * f4 * tq * C                         # f32 query tile (2 bufs)
        outs = 2 * 2 * f4 * tq * C                      # out + layer_result (2 bufs each)
        scores = H * tq * T * (f4 + 2 * bf2)            # f32 scores + exp / prob copies
        ffn = tq * F * (f4 + bf2)                       # fc1 activations
        misc = 8 * f4 * tq * C + 2 * f4 * T * C         # LN temps + t==0 K/V f32 temporaries
        return weights + vectors + kv_scr + xkv_in + xq_in + outs + scores + ffn + misc

    budget = int(capacity * 0.80)
    if q_tile is None:
        q_tile = T
        if est(T) > budget:
            divisible = [c for c in (512, 256, 128) if c < T and T % c == 0]
            for cand in divisible:
                if est(cand) <= budget:
                    q_tile = cand
                    break
            else:
                if divisible:                           # nothing fits: smallest score slab
                    q_tile = divisible[-1]
    limit = est(q_tile) + (8 << 20)
    limit = int(min(max(limit, 32 << 20), int(capacity * 0.85)))
    return q_tile, limit


def wav2vec2_encoder_layer(x_tbc, params, *, num_heads, eps=1e-5, q_tile=None,
                           use_batched_heads=True, single_buffer_consts=True):
    """x_tbc: (T, B, C) float32. Returns (out (T,B,C), (None, layer_result (T,B,C)))."""
    x = jnp.transpose(x_tbc, (1, 0, 2))                 # kernel layout (B, T, C)
    B, T, C = x.shape
    F = params["w1"].shape[1]
    Dh = C // num_heads
    scale = Dh ** -0.5

    capacity = _vmem_capacity_bytes()
    q_tile, vmem_limit = _vmem_plan(T, C, F, num_heads, capacity,
                                    single_buffer_consts, q_tile=q_tile)
    assert T % q_tile == 0
    n_t = T // q_tile

    bf16 = jnp.bfloat16
    x_q = x                                             # f32 query rows / residual stream
    x_kv = x.astype(bf16)                               # bf16 full-seq input for K/V only

    def rv(a):                                          # f32 row vector, broadcasts over (Tq, C)
        return a.reshape(1, -1).astype(jnp.float32)

    flat = [
        (params["wq"] * scale).astype(bf16), rv(params["bq"] * scale),
        params["wk"].astype(bf16), rv(params["bk"]),
        params["wv"].astype(bf16), rv(params["bv"]),
        params["wo"].astype(bf16), rv(params["bo"]),
        rv(params["g1"]), rv(params["be1"]),
        params["w1"].astype(bf16), rv(params["b1"]),
        params["w2"].astype(bf16), rv(params["b2"]),
        rv(params["g2"]), rv(params["be2"]),
    ]

    def const_spec(a):
        # Constant index_map -> single-buffer the weights (halves resident weight VMEM).
        kwargs = dict(pipeline_mode=pl.Buffered(1)) if single_buffer_consts else {}
        return pl.BlockSpec(a.shape, lambda b, t, _n=a.ndim: (0,) * _n, **kwargs)

    kv_shape = (num_heads, T, Dh) if use_batched_heads else (T, C)
    scratch = [pltpu.VMEM(kv_shape, bf16), pltpu.VMEM(kv_shape, bf16)]
    if not use_batched_heads:
        scratch.append(pltpu.VMEM((q_tile, C), bf16))   # fallback head-merge slab

    kernel = functools.partial(
        _encoder_layer_kernel, num_heads=num_heads, head_dim=Dh, eps=eps,
        use_batched_heads=use_batched_heads, exp_dtype=_softmax_exp_dtype())

    out, lres = pl.pallas_call(
        kernel,
        out_shape=(jax.ShapeDtypeStruct((B, T, C), x.dtype),
                   jax.ShapeDtypeStruct((B, T, C), x.dtype)),
        grid_spec=pltpu.PrefetchScalarGridSpec(
            num_scalar_prefetch=0,
            grid=(B, n_t),
            in_specs=[
                pl.BlockSpec((pl.Squeezed(), q_tile, C), lambda b, t: (b, t, 0)),  # f32 query rows
                pl.BlockSpec((pl.Squeezed(), T, C), lambda b, t: (b, 0, 0)),       # bf16 full seq (K/V)
            ] + [const_spec(a) for a in flat],
            out_specs=[
                pl.BlockSpec((pl.Squeezed(), q_tile, C), lambda b, t: (b, t, 0)),
                pl.BlockSpec((pl.Squeezed(), q_tile, C), lambda b, t: (b, t, 0)),
            ],
            scratch_shapes=scratch,
        ),
        compiler_params=pltpu.CompilerParams(
            # K/V persist in scratch across the t axis -> t must be "arbitrary";
            # B stays "parallel" so megacore (v7x) shards on batch.
            # TODO(synk): if B == 1 on v7x, a separate K/V-precompute kernel would let the
            # t axis stay "parallel" and recover megacore sharding.
            dimension_semantics=("parallel", "arbitrary"),
            vmem_limit_bytes=vmem_limit,
        ),
    )(x_q, x_kv, *flat)

    # TODO(synk): KV-tiled online softmax (score slab independent of T) not implemented;
    # the score block is bounded by the VMEM-budgeted q_tile instead.
    return (jnp.transpose(out, (1, 0, 2)),
            (None, jnp.transpose(lres, (1, 0, 2))))


def _reference(x_tbc, p, num_heads, eps=1e-5):
    """Pure-JAX f32 reference of the post-LN forward (eval mode)."""
    x = jnp.transpose(x_tbc, (1, 0, 2))  # (B, T, C)
    C = x.shape[-1]
    Dh = C // num_heads
    scale = Dh ** -0.5
    q = (x @ p["wq"] + p["bq"]) * scale
    k = x @ p["wk"] + p["bk"]
    v = x @ p["wv"] + p["bv"]

    def split(a):  # (B,T,C) -> (B,H,T,Dh)
        B, T, _ = a.shape
        return a.reshape(B, T, num_heads, Dh).transpose(0, 2, 1, 3)

    qh, kh, vh = split(q), split(k), split(v)
    s = jnp.einsum("bhqd,bhkd->bhqk", qh, kh)
    pmat = jax.nn.softmax(s, axis=-1)
    o = jnp.einsum("bhqk,bhkd->bhqd", pmat, vh)
    o = o.transpose(0, 2, 1, 3).reshape(x.shape)
    attn = o @ p["wo"] + p["bo"]

    def ln(a, g, b):
        mu = jnp.mean(a, axis=-1, keepdims=True)
        var = jnp.mean(jnp.square(a - mu), axis=-1, keepdims=True)
        return (a - mu) * jax.lax.rsqrt(var + eps) * g + b

    x1 = ln(x + attn, p["g1"], p["be1"])
    ff = jnp.maximum(x1 @ p["w1"] + p["b1"], 0.0) @ p["w2"] + p["b2"]
    out = ln(x1 + ff, p["g2"], p["be2"])
    return jnp.transpose(out, (1, 0, 2)), jnp.transpose(ff, (1, 0, 2))


def make_params(key, embed_dim, ffn_dim):
    ks = jax.random.split(key, 12)
    s = 0.02
    C, F = embed_dim, ffn_dim
    # Linear weights stored pre-transposed as (in, out) so the kernel does x @ W + b,
    # matching PyTorch's y = x @ W_pt.T + b.
    return {
        "wq": s * jax.random.normal(ks[0], (C, C), jnp.float32),
        "bq": s * jax.random.normal(ks[1], (C,), jnp.float32),
        "wk": s * jax.random.normal(ks[2], (C, C), jnp.float32),
        "bk": s * jax.random.normal(ks[3], (C,), jnp.float32),
        "wv": s * jax.random.normal(ks[4], (C, C), jnp.float32),
        "bv": s * jax.random.normal(ks[5], (C,), jnp.float32),
        "wo": s * jax.random.normal(ks[6], (C, C), jnp.float32),
        "bo": s * jax.random.normal(ks[7], (C,), jnp.float32),
        "g1": jnp.ones((C,), jnp.float32),
        "be1": jnp.zeros((C,), jnp.float32),
        "w1": s * jax.random.normal(ks[8], (C, F), jnp.float32),
        "b1": s * jax.random.normal(ks[9], (F,), jnp.float32),
        "w2": s * jax.random.normal(ks[10], (F, C), jnp.float32),
        "b2": s * jax.random.normal(ks[11], (C,), jnp.float32),
        "g2": jnp.ones((C,), jnp.float32),
        "be2": jnp.zeros((C,), jnp.float32),
    }


if __name__ == "__main__":
    # Small shapes consistent with the module: seq=8, batch=2, embed=32, ffn=64, heads=4.
    T, B, C, FFN, H = 8, 2, 32, 64, 4
    key = jax.random.PRNGKey(0)
    kx, kp = jax.random.split(key)
    x = jax.random.normal(kx, (T, B, C), jnp.float32)   # fairseq (T, B, C) layout
    params = make_params(kp, C, FFN)

    ref_out, ref_lres = _reference(x, params, H)

    def run_and_check(**cfg):
        out, (_, lres) = wav2vec2_encoder_layer(x, params, num_heads=H, **cfg)
        out = jax.block_until_ready(out)
        lres = jax.block_until_ready(lres)
        # bf16 matmuls / bf16 exp with f32 accumulation, approx reciprocal -> looser tolerance.
        assert jnp.allclose(out, ref_out, atol=2e-2, rtol=2e-2), "output mismatch"
        assert jnp.allclose(lres, ref_lres, atol=2e-2, rtol=2e-2), "layer_result mismatch"

    configs = (
        dict(use_batched_heads=True, single_buffer_consts=True),    # preferred path
        dict(use_batched_heads=True, single_buffer_consts=False),   # if Buffered(1) unsupported
        dict(use_batched_heads=False, single_buffer_consts=False),  # per-head fallback
    )
    last_err = None
    for cfg in configs:
        try:
            run_and_check(**cfg)
            last_err = None
            break
        except Exception as e:  # toolchain-dependent fallbacks
            last_err = e
    if last_err is not None:
        raise last_err

    # TODO(synk): key_padding_mask / attn_mask / need_weights attention probabilities and
    # dropout (identity in eval mode) are not implemented; attn is returned as None.
    print("KERNEL_OK")
</pallas_src>

<mosaic_0001>
module attributes {stable_mosaic.version = 11 : i64} {
  func.func @_encoder_layer_kernel(%arg0: i32, %arg1: i32, %arg2: memref<1x8x32xf32, #tpu.memory_space<vmem>>, %arg3: memref<1x8x32xbf16, #tpu.memory_space<vmem>>, %arg4: memref<32x32xbf16, #tpu.memory_space<vmem>>, %arg5: memref<1x32xf32, #tpu.memory_space<vmem>>, %arg6: memref<32x32xbf16, #tpu.memory_space<vmem>>, %arg7: memref<1x32xf32, #tpu.memory_space<vmem>>, %arg8: memref<32x32xbf16, #tpu.memory_space<vmem>>, %arg9: memref<1x32xf32, #tpu.memory_space<vmem>>, %arg10: memref<32x32xbf16, #tpu.memory_space<vmem>>, %arg11: memref<1x32xf32, #tpu.memory_space<vmem>>, %arg12: memref<1x32xf32, #tpu.memory_space<vmem>>, %arg13: memref<1x32xf32, #tpu.memory_space<vmem>>, %arg14: memref<32x64xbf16, #tpu.memory_space<vmem>>, %arg15: memref<1x64xf32, #tpu.memory_space<vmem>>, %arg16: memref<64x32xbf16, #tpu.memory_space<vmem>>, %arg17: memref<1x32xf32, #tpu.memory_space<vmem>>, %arg18: memref<1x32xf32, #tpu.memory_space<vmem>>, %arg19: memref<1x32xf32, #tpu.memory_space<vmem>>, %arg20: memref<1x8x32xf32, #tpu.memory_space<vmem>>, %arg21: memref<1x8x32xf32, #tpu.memory_space<vmem>>, %arg22: memref<8x32xbf16, #tpu.memory_space<vmem>>, %arg23: memref<8x32xbf16, #tpu.memory_space<vmem>>, %arg24: memref<8x32xbf16, #tpu.memory_space<vmem>>) attributes {dimension_semantics = [#tpu.dimension_semantics<parallel>, #tpu.dimension_semantics<arbitrary>], iteration_bounds = array<i64: 2, 1>, scalar_prefetch = 0 : i64, scratch_operands = 3 : i64, tpu.core_type = #tpu.core_type<tc>, window_params = [{transform_indices = @transform_0, window_bounds = array<i64: 1, 8, 32>}, {transform_indices = @transform_1, window_bounds = array<i64: 1, 8, 32>}, {pipeline_mode = #tpu.pipeline_mode<synchronous>, transform_indices = @transform_2, window_bounds = array<i64: 32, 32>}, {pipeline_mode = #tpu.pipeline_mode<synchronous>, transform_indices = @transform_3, window_bounds = array<i64: 1, 32>}, {pipeline_mode = #tpu.pipeline_mode<synchronous>, transform_indices = @transform_4, window_bounds = array<i64: 32, 32>}, {pipeline_mode = #tpu.pipeline_mode<synchronous>, transform_indices = @transform_5, window_bounds = array<i64: 1, 32>}, {pipeline_mode = #tpu.pipeline_mode<synchronous>, transform_indices = @transform_6, window_bounds = array<i64: 32, 32>}, {pipeline_mode = #tpu.pipeline_mode<synchronous>, transform_indices = @transform_7, window_bounds = array<i64: 1, 32>}, {pipeline_mode = #tpu.pipeline_mode<synchronous>, transform_indices = @transform_8, window_bounds = array<i64: 32, 32>}, {pipeline_mode = #tpu.pipeline_mode<synchronous>, transform_indices = @transform_9, window_bounds = array<i64: 1, 32>}, {pipeline_mode = #tpu.pipeline_mode<synchronous>, transform_indices = @transform_10, window_bounds = array<i64: 1, 32>}, {pipeline_mode = #tpu.pipeline_mode<synchronous>, transform_indices = @transform_11, window_bounds = array<i64: 1, 32>}, {pipeline_mode = #tpu.pipeline_mode<synchronous>, transform_indices = @transform_12, window_bounds = array<i64: 32, 64>}, {pipeline_mode = #tpu.pipeline_mode<synchronous>, transform_indices = @transform_13, window_bounds = array<i64: 1, 64>}, {pipeline_mode = #tpu.pipeline_mode<synchronous>, transform_indices = @transform_14, window_bounds = array<i64: 64, 32>}, {pipeline_mode = #tpu.pipeline_mode<synchronous>, transform_indices = @transform_15, window_bounds = array<i64: 1, 32>}, {pipeline_mode = #tpu.pipeline_mode<synchronous>, transform_indices = @transform_16, window_bounds = array<i64: 1, 32>}, {pipeline_mode = #tpu.pipeline_mode<synchronous>, transform_indices = @transform_17, window_bounds = array<i64: 1, 32>}, {transform_indices = @transform_18, window_bounds = array<i64: 1, 8, 32>}, {transform_indices = @transform_19, window_bounds = array<i64: 1, 8, 32>}]} {
    %c0_i32 = arith.constant 0 : i32
    %0 = arith.cmpi eq, %arg1, %c0_i32 : i32
    %1 = arith.extui %0 : i1 to i32
    %c0_i32_0 = arith.constant 0 : i32
    %2 = arith.cmpi ne, %1, %c0_i32_0 : i32
    scf.if %2 {
      %c0_86 = arith.constant 0 : index
      %c0_87 = arith.constant 0 : index
      %c0_88 = arith.constant 0 : index
      %163 = vector.load %arg3[%c0_86, %c0_87, %c0_88] : memref<1x8x32xbf16, #tpu.memory_space<vmem>>, vector<1x8x32xbf16>
      %164 = vector.shape_cast %163 : vector<1x8x32xbf16> to vector<8x32xbf16>
      %c0_89 = arith.constant 0 : index
      %c0_90 = arith.constant 0 : index
      %165 = vector.load %arg6[%c0_89, %c0_90] : memref<32x32xbf16, #tpu.memory_space<vmem>>, vector<32x32xbf16>
      %cst_91 = arith.constant dense<0.000000e+00> : vector<8x32xf32>
      %166 = tpu.matmul %164, %165, %cst_91 {dimension_numbers = #tpu.dot_dimension_numbers<[1], [0], [0], [1], [0, 0, 1, 1], [], []>} : vector<8x32xbf16>, vector<32x32xbf16>, vector<8x32xf32> -> vector<8x32xf32>
      %c0_92 = arith.constant 0 : index
      %c0_93 = arith.constant 0 : index
      %167 = vector.load %arg7[%c0_92, %c0_93] : memref<1x32xf32, #tpu.memory_space<vmem>>, vector<1x32xf32>
      %168 = vector.broadcast %167 : vector<1x32xf32> to vector<8x32xf32>
      %169 = arith.addf %166, %168 : vector<8x32xf32>
      %c0_94 = arith.constant 0 : index
      %c0_95 = arith.constant 0 : index
      %170 = vector.load %arg8[%c0_94, %c0_95] : memref<32x32xbf16, #tpu.memory_space<vmem>>, vector<32x32xbf16>
      %cst_96 = arith.constant dense<0.000000e+00> : vector<8x32xf32>
      %171 = tpu.matmul %164, %170, %cst_96 {dimension_numbers = #tpu.dot_dimension_numbers<[1], [0], [0], [1], [0, 0, 1, 1], [], []>} : vector<8x32xbf16>, vector<32x32xbf16>, vector<8x32xf32> -> vector<8x32xf32>
      %c0_97 = arith.constant 0 : index
      %c0_98 = arith.constant 0 : index
      %172 = vector.load %arg9[%c0_97, %c0_98] : memref<1x32xf32, #tpu.memory_space<vmem>>, vector<1x32xf32>
      %173 = vector.broadcast %172 : vector<1x32xf32> to vector<8x32xf32>
      %174 = arith.addf %171, %173 : vector<8x32xf32>
      %175 = arith.truncf %169 : vector<8x32xf32> to vector<8x32xbf16>
      %c0_99 = arith.constant 0 : index
      %c0_100 = arith.constant 0 : index
      %176 = vector.load %arg22[%c0_99, %c0_100] : memref<8x32xbf16, #tpu.memory_space<vmem>>, vector<8x32xbf16>
      tpu.vector_store %arg22[%c0_99, %c0_100], %175 {strides = array<i32>} : memref<8x32xbf16, #tpu.memory_space<vmem>>, vector<8x32xbf16>,
      %177 = arith.truncf %174 : vector<8x32xf32> to vector<8x32xbf16>
      %c0_101 = arith.constant 0 : index
      %c0_102 = arith.constant 0 : index
      %178 = vector.load %arg23[%c0_101, %c0_102] : memref<8x32xbf16, #tpu.memory_space<vmem>>, vector<8x32xbf16>
      tpu.vector_store %arg23[%c0_101, %c0_102], %177 {strides = array<i32>} : memref<8x32xbf16, #tpu.memory_space<vmem>>, vector<8x32xbf16>,
    } else {
    }
    %c0 = arith.constant 0 : index
    %c0_1 = arith.constant 0 : index
    %c0_2 = arith.constant 0 : index
    %3 = vector.load %arg2[%c0, %c0_1, %c0_2] : memref<1x8x32xf32, #tpu.memory_space<vmem>>, vector<1x8x32xf32>
    %4 = vector.shape_cast %3 : vector<1x8x32xf32> to vector<8x32xf32>
    %5 = arith.truncf %4 : vector<8x32xf32> to vector<8x32xbf16>
    %c0_3 = arith.constant 0 : index
    %c0_4 = arith.constant 0 : index
    %6 = vector.load %arg4[%c0_3, %c0_4] : memref<32x32xbf16, #tpu.memory_space<vmem>>, vector<32x32xbf16>
    %cst = arith.constant dense<0.000000e+00> : vector<8x32xf32>
    %7 = tpu.matmul %5, %6, %cst {dimension_numbers = #tpu.dot_dimension_numbers<[1], [0], [0], [1], [0, 0, 1, 1], [], []>} : vector<8x32xbf16>, vector<32x32xbf16>, vector<8x32xf32> -> vector<8x32xf32>
    %c0_5 = arith.constant 0 : index
    %c0_6 = arith.constant 0 : index
    %8 = vector.load %arg5[%c0_5, %c0_6] : memref<1x32xf32, #tpu.memory_space<vmem>>, vector<1x32xf32>
    %9 = vector.broadcast %8 : vector<1x32xf32> to vector<8x32xf32>
    %10 = arith.addf %7, %9 : vector<8x32xf32>
    %11 = vector.extract_strided_slice %10 {offsets = [0, 0], sizes = [8, 8], strides = [1, 1]} : vector<8x32xf32> to vector<8x8xf32>
    %12 = arith.truncf %11 : vector<8x8xf32> to vector<8x8xbf16>
    %c0_7 = arith.constant 0 : index
    %c0_8 = arith.constant 0 : index
    %13 = vector.load %arg22[%c0_7, %c0_8] : memref<8x32xbf16, #tpu.memory_space<vmem>>, vector<8x8xbf16>
    %c0_9 = arith.constant 0 : index
    %c0_10 = arith.constant 0 : index
    %14 = vector.load %arg23[%c0_9, %c0_10] : memref<8x32xbf16, #tpu.memory_space<vmem>>, vector<8x8xbf16>
    %15 = tpu.transpose %13, [1, 0] : vector<8x8xbf16> -> vector<8x8xbf16>
    %cst_11 = arith.constant dense<0.000000e+00> : vector<8x8xf32>
    %16 = tpu.matmul %12, %15, %cst_11 {dimension_numbers = #tpu.dot_dimension_numbers<[1], [0], [0], [1], [0, 0, 1, 1], [], []>} : vector<8x8xbf16>, vector<8x8xbf16>, vector<8x8xf32> -> vector<8x8xf32>
    %cst_12 = arith.constant dense<0xFF800000> : vector<8xf32>
    %17 = vector.multi_reduction <maximumf>, %16, %cst_12 [1] : vector<8x8xf32> to vector<8xf32>
    %18 = vector.shape_cast %17 : vector<8xf32> to vector<8x1xf32>
    %19 = vector.broadcast %18 : vector<8x1xf32> to vector<8x8xf32>
    %20 = arith.subf %16, %19 : vector<8x8xf32>
    %21 = math.exp %20 : vector<8x8xf32>
    %cst_13 = arith.constant dense<0.000000e+00> : vector<8xf32>
    %22 = vector.multi_reduction <add>, %21, %cst_13 [1] : vector<8x8xf32> to vector<8xf32>
    %23 = vector.shape_cast %22 : vector<8xf32> to vector<8x1xf32>
    %24 = tpu.reciprocal %23 {approx = true} : vector<8x1xf32> -> vector<8x1xf32>
    %25 = arith.truncf %21 : vector<8x8xf32> to vector<8x8xbf16>
    %cst_14 = arith.constant dense<0.000000e+00> : vector<8x8xf32>
    %26 = tpu.matmul %25, %14, %cst_14 {dimension_numbers = #tpu.dot_dimension_numbers<[1], [0], [0], [1], [0, 0, 1, 1], [], []>} : vector<8x8xbf16>, vector<8x8xbf16>, vector<8x8xf32> -> vector<8x8xf32>
    %27 = vector.broadcast %24 : vector<8x1xf32> to vector<8x8xf32>
    %28 = arith.mulf %26, %27 : vector<8x8xf32>
    %29 = arith.truncf %28 : vector<8x8xf32> to vector<8x8xbf16>
    %c0_15 = arith.constant 0 : index
    %c0_16 = arith.constant 0 : index
    %30 = vector.load %arg24[%c0_15, %c0_16] : memref<8x32xbf16, #tpu.memory_space<vmem>>, vector<8x8xbf16>
    tpu.vector_store %arg24[%c0_15, %c0_16], %29 {strides = array<i32>} : memref<8x32xbf16, #tpu.memory_space<vmem>>, vector<8x8xbf16>,
    %31 = vector.extract_strided_slice %10 {offsets = [0, 8], sizes = [8, 8], strides = [1, 1]} : vector<8x32xf32> to vector<8x8xf32>
    %32 = arith.truncf %31 : vector<8x8xf32> to vector<8x8xbf16>
    %c0_17 = arith.constant 0 : index
    %c8 = arith.constant 8 : index
    %33 = vector.load %arg22[%c0_17, %c8] : memref<8x32xbf16, #tpu.memory_space<vmem>>, vector<8x8xbf16>
    %c0_18 = arith.constant 0 : index
    %c8_19 = arith.constant 8 : index
    %34 = vector.load %arg23[%c0_18, %c8_19] : memref<8x32xbf16, #tpu.memory_space<vmem>>, vector<8x8xbf16>
    %35 = tpu.transpose %33, [1, 0] : vector<8x8xbf16> -> vector<8x8xbf16>
    %cst_20 = arith.constant dense<0.000000e+00> : vector<8x8xf32>
    %36 = tpu.matmul %32, %35, %cst_20 {dimension_numbers = #tpu.dot_dimension_numbers<[1], [0], [0], [1], [0, 0, 1, 1], [], []>} : vector<8x8xbf16>, vector<8x8xbf16>, vector<8x8xf32> -> vector<8x8xf32>
    %cst_21 = arith.constant dense<0xFF800000> : vector<8xf32>
    %37 = vector.multi_reduction <maximumf>, %36, %cst_21 [1] : vector<8x8xf32> to vector<8xf32>
    %38 = vector.shape_cast %37 : vector<8xf32> to vector<8x1xf32>
    %39 = vector.broadcast %38 : vector<8x1xf32> to vector<8x8xf32>
    %40 = arith.subf %36, %39 : vector<8x8xf32>
    %41 = math.exp %40 : vector<8x8xf32>
    %cst_22 = arith.constant dense<0.000000e+00> : vector<8xf32>
    %42 = vector.multi_reduction <add>, %41, %cst_22 [1] : vector<8x8xf32> to vector<8xf32>
    %43 = vector.shape_cast %42 : vector<8xf32> to vector<8x1xf32>
    %44 = tpu.reciprocal %43 {approx = true} : vector<8x1xf32> -> vector<8x1xf32>
    %45 = arith.truncf %41 : vector<8x8xf32> to vector<8x8xbf16>
    %cst_23 = arith.constant dense<0.000000e+00> : vector<8x8xf32>
    %46 = tpu.matmul %45, %34, %cst_23 {dimension_numbers = #tpu.dot_dimension_numbers<[1], [0], [0], [1], [0, 0, 1, 1], [], []>} : vector<8x8xbf16>, vector<8x8xbf16>, vector<8x8xf32> -> vector<8x8xf32>
    %47 = vector.broadcast %44 : vector<8x1xf32> to vector<8x8xf32>
    %48 = arith.mulf %46, %47 : vector<8x8xf32>
    %49 = arith.truncf %48 : vector<8x8xf32> to vector<8x8xbf16>
    %c0_24 = arith.constant 0 : index
    %c8_25 = arith.constant 8 : index
    %50 = vector.load %arg24[%c0_24, %c8_25] : memref<8x32xbf16, #tpu.memory_space<vmem>>, vector<8x8xbf16>
    tpu.vector_store %arg24[%c0_24, %c8_25], %49 {strides = array<i32>} : memref<8x32xbf16, #tpu.memory_space<vmem>>, vector<8x8xbf16>,
    %51 = vector.extract_strided_slice %10 {offsets = [0, 16], sizes = [8, 8], strides = [1, 1]} : vector<8x32xf32> to vector<8x8xf32>
    %52 = arith.truncf %51 : vector<8x8xf32> to vector<8x8xbf16>
    %c0_26 = arith.constant 0 : index
    %c16 = arith.constant 16 : index
    %53 = vector.load %arg22[%c0_26, %c16] : memref<8x32xbf16, #tpu.memory_space<vmem>>, vector<8x8xbf16>
    %c0_27 = arith.constant 0 : index
    %c16_28 = arith.constant 16 : index
    %54 = vector.load %arg23[%c0_27, %c16_28] : memref<8x32xbf16, #tpu.memory_space<vmem>>, vector<8x8xbf16>
    %55 = tpu.transpose %53, [1, 0] : vector<8x8xbf16> -> vector<8x8xbf16>
    %cst_29 = arith.constant dense<0.000000e+00> : vector<8x8xf32>
    %56 = tpu.matmul %52, %55, %cst_29 {dimension_numbers = #tpu.dot_dimension_numbers<[1], [0], [0], [1], [0, 0, 1, 1], [], []>} : vector<8x8xbf16>, vector<8x8xbf16>, vector<8x8xf32> -> vector<8x8xf32>
    %cst_30 = arith.constant dense<0xFF800000> : vector<8xf32>
    %57 = vector.multi_reduction <maximumf>, %56, %cst_30 [1] : vector<8x8xf32> to vector<8xf32>
    %58 = vector.shape_cast %57 : vector<8xf32> to vector<8x1xf32>
    %59 = vector.broadcast %58 : vector<8x1xf32> to vector<8x8xf32>
    %60 = arith.subf %56, %59 : vector<8x8xf32>
    %61 = math.exp %60 : vector<8x8xf32>
    %cst_31 = arith.constant dense<0.000000e+00> : vector<8xf32>
    %62 = vector.multi_reduction <add>, %61, %cst_31 [1] : vector<8x8xf32> to vector<8xf32>
    %63 = vector.shape_cast %62 : vector<8xf32> to vector<8x1xf32>
    %64 = tpu.reciprocal %63 {approx = true} : vector<8x1xf32> -> vector<8x1xf32>
    %65 = arith.truncf %61 : vector<8x8xf32> to vector<8x8xbf16>
    %cst_32 = arith.constant dense<0.000000e+00> : vector<8x8xf32>
    %66 = tpu.matmul %65, %54, %cst_32 {dimension_numbers = #tpu.dot_dimension_numbers<[1], [0], [0], [1], [0, 0, 1, 1], [], []>} : vector<8x8xbf16>, vector<8x8xbf16>, vector<8x8xf32> -> vector<8x8xf32>
    %67 = vector.broadcast %64 : vector<8x1xf32> to vector<8x8xf32>
    %68 = arith.mulf %66, %67 : vector<8x8xf32>
    %69 = arith.truncf %68 : vector<8x8xf32> to vector<8x8xbf16>
    %c0_33 = arith.constant 0 : index
    %c16_34 = arith.constant 16 : index
    %70 = vector.load %arg24[%c0_33, %c16_34] : memref<8x32xbf16, #tpu.memory_space<vmem>>, vector<8x8xbf16>
    tpu.vector_store %arg24[%c0_33, %c16_34], %69 {strides = array<i32>} : memref<8x32xbf16, #tpu.memory_space<vmem>>, vector<8x8xbf16>,
    %71 = vector.extract_strided_slice %10 {offsets = [0, 24], sizes = [8, 8], strides = [1, 1]} : vector<8x32xf32> to vector<8x8xf32>
    %72 = arith.truncf %71 : vector<8x8xf32> to vector<8x8xbf16>
    %c0_35 = arith.constant 0 : index
    %c24 = arith.constant 24 : index
    %73 = vector.load %arg22[%c0_35, %c24] : memref<8x32xbf16, #tpu.memory_space<vmem>>, vector<8x8xbf16>
    %c0_36 = arith.constant 0 : index
    %c24_37 = arith.constant 24 : index
    %74 = vector.load %arg23[%c0_36, %c24_37] : memref<8x32xbf16, #tpu.memory_space<vmem>>, vector<8x8xbf16>
    %75 = tpu.transpose %73, [1, 0] : vector<8x8xbf16> -> vector<8x8xbf16>
    %cst_38 = arith.constant dense<0.000000e+00> : vector<8x8xf32>
    %76 = tpu.matmul %72, %75, %cst_38 {dimension_numbers = #tpu.dot_dimension_numbers<[1], [0], [0], [1], [0, 0, 1, 1], [], []>} : vector<8x8xbf16>, vector<8x8xbf16>, vector<8x8xf32> -> vector<8x8xf32>
    %cst_39 = arith.constant dense<0xFF800000> : vector<8xf32>
    %77 = vector.multi_reduction <maximumf>, %76, %cst_39 [1] : vector<8x8xf32> to vector<8xf32>
    %78 = vector.shape_cast %77 : vector<8xf32> to vector<8x1xf32>
    %79 = vector.broadcast %78 : vector<8x1xf32> to vector<8x8xf32>
    %80 = arith.subf %76, %79 : vector<8x8xf32>
    %81 = math.exp %80 : vector<8x8xf32>
    %cst_40 = arith.constant dense<0.000000e+00> : vector<8xf32>
    %82 = vector.multi_reduction <add>, %81, %cst_40 [1] : vector<8x8xf32> to vector<8xf32>
    %83 = vector.shape_cast %82 : vector<8xf32> to vector<8x1xf32>
    %84 = tpu.reciprocal %83 {approx = true} : vector<8x1xf32> -> vector<8x1xf32>
    %85 = arith.truncf %81 : vector<8x8xf32> to vector<8x8xbf16>
    %cst_41 = arith.constant dense<0.000000e+00> : vector<8x8xf32>
    %86 = tpu.matmul %85, %74, %cst_41 {dimension_numbers = #tpu.dot_dimension_numbers<[1], [0], [0], [1], [0, 0, 1, 1], [], []>} : vector<8x8xbf16>, vector<8x8xbf16>, vector<8x8xf32> -> vector<8x8xf32>
    %87 = vector.broadcast %84 : vector<8x1xf32> to vector<8x8xf32>
    %88 = arith.mulf %86, %87 : vector<8x8xf32>
    %89 = arith.truncf %88 : vector<8x8xf32> to vector<8x8xbf16>
    %c0_42 = arith.constant 0 : index
    %c24_43 = arith.constant 24 : index
    %90 = vector.load %arg24[%c0_42, %c24_43] : memref<8x32xbf16, #tpu.memory_space<vmem>>, vector<8x8xbf16>
    tpu.vector_store %arg24[%c0_42, %c24_43], %89 {strides = array<i32>} : memref<8x32xbf16, #tpu.memory_space<vmem>>, vector<8x8xbf16>,
    %c0_44 = arith.constant 0 : index
    %c0_45 = arith.constant 0 : index
    %91 = vector.load %arg24[%c0_44, %c0_45] : memref<8x32xbf16, #tpu.memory_space<vmem>>, vector<8x32xbf16>
    %c0_46 = arith.constant 0 : index
    %c0_47 = arith.constant 0 : index
    %92 = vector.load %arg10[%c0_46, %c0_47] : memref<32x32xbf16, #tpu.memory_space<vmem>>, vector<32x32xbf16>
    %cst_48 = arith.constant dense<0.000000e+00> : vector<8x32xf32>
    %93 = tpu.matmul %91, %92, %cst_48 {dimension_numbers = #tpu.dot_dimension_numbers<[1], [0], [0], [1], [0, 0, 1, 1], [], []>} : vector<8x32xbf16>, vector<32x32xbf16>, vector<8x32xf32> -> vector<8x32xf32>
    %c0_49 = arith.constant 0 : index
    %c0_50 = arith.constant 0 : index
    %94 = vector.load %arg11[%c0_49, %c0_50] : memref<1x32xf32, #tpu.memory_space<vmem>>, vector<1x32xf32>
    %95 = vector.broadcast %94 : vector<1x32xf32> to vector<8x32xf32>
    %96 = arith.addf %93, %95 : vector<8x32xf32>
    %97 = arith.addf %4, %96 : vector<8x32xf32>
    %cst_51 = arith.constant dense<0.000000e+00> : vector<8xf32>
    %98 = vector.multi_reduction <add>, %97, %cst_51 [1] : vector<8x32xf32> to vector<8xf32>
    %99 = vector.shape_cast %98 : vector<8xf32> to vector<8x1xf32>
    %cst_52 = arith.constant 3.200000e+01 : f32
    %100 = vector.broadcast %cst_52 : f32 to vector<8x1xf32>
    %101 = arith.divf %99, %100 : vector<8x1xf32>
    %102 = vector.broadcast %101 : vector<8x1xf32> to vector<8x32xf32>
    %103 = arith.subf %97, %102 : vector<8x32xf32>
    %104 = arith.mulf %103, %103 : vector<8x32xf32>
    %cst_53 = arith.constant dense<0.000000e+00> : vector<8xf32>
    %105 = vector.multi_reduction <add>, %104, %cst_53 [1] : vector<8x32xf32> to vector<8xf32>
    %106 = vector.shape_cast %105 : vector<8xf32> to vector<8x1xf32>
    %cst_54 = arith.constant 3.200000e+01 : f32
    %107 = vector.broadcast %cst_54 : f32 to vector<8x1xf32>
    %108 = arith.divf %106, %107 : vector<8x1xf32>
    %cst_55 = arith.constant 9.99999974E-6 : f32
    %109 = vector.broadcast %cst_55 : f32 to vector<8x1xf32>
    %110 = arith.addf %108, %109 : vector<8x1xf32>
    %111 = math.rsqrt %110 : vector<8x1xf32>
    %112 = vector.broadcast %111 : vector<8x1xf32> to vector<8x32xf32>
    %113 = arith.mulf %103, %112 : vector<8x32xf32>
    %c0_56 = arith.constant 0 : index
    %c0_57 = arith.constant 0 : index
    %114 = vector.load %arg12[%c0_56, %c0_57] : memref<1x32xf32, #tpu.memory_space<vmem>>, vector<1x32xf32>
    %115 = vector.broadcast %114 : vector<1x32xf32> to vector<8x32xf32>
    %116 = arith.mulf %113, %115 : vector<8x32xf32>
    %c0_58 = arith.constant 0 : index
    %c0_59 = arith.constant 0 : index
    %117 = vector.load %arg13[%c0_58, %c0_59] : memref<1x32xf32, #tpu.memory_space<vmem>>, vector<1x32xf32>
    %118 = vector.broadcast %117 : vector<1x32xf32> to vector<8x32xf32>
    %119 = arith.addf %116, %118 : vector<8x32xf32>
    %120 = arith.truncf %119 : vector<8x32xf32> to vector<8x32xbf16>
    %c0_60 = arith.constant 0 : index
    %c0_61 = arith.constant 0 : index
    %121 = vector.load %arg14[%c0_60, %c0_61] : memref<32x64xbf16, #tpu.memory_space<vmem>>, vector<32x64xbf16>
    %cst_62 = arith.constant dense<0.000000e+00> : vector<8x64xf32>
    %122 = tpu.matmul %120, %121, %cst_62 {dimension_numbers = #tpu.dot_dimension_numbers<[1], [0], [0], [1], [0, 0, 1, 1], [], []>} : vector<8x32xbf16>, vector<32x64xbf16>, vector<8x64xf32> -> vector<8x64xf32>
    %c0_63 = arith.constant 0 : index
    %c0_64 = arith.constant 0 : index
    %123 = vector.load %arg15[%c0_63, %c0_64] : memref<1x64xf32, #tpu.memory_space<vmem>>, vector<1x64xf32>
    %124 = vector.broadcast %123 : vector<1x64xf32> to vector<8x64xf32>
    %125 = arith.addf %122, %124 : vector<8x64xf32>
    %cst_65 = arith.constant 0.000000e+00 : f32
    %126 = vector.broadcast %cst_65 : f32 to vector<8x64xf32>
    %127 = arith.maximumf %125, %126 : vector<8x64xf32>
    %128 = arith.truncf %127 : vector<8x64xf32> to vector<8x64xbf16>
    %c0_66 = arith.constant 0 : index
    %c0_67 = arith.constant 0 : index
    %129 = vector.load %arg16[%c0_66, %c0_67] : memref<64x32xbf16, #tpu.memory_space<vmem>>, vector<64x32xbf16>
    %cst_68 = arith.constant dense<0.000000e+00> : vector<8x32xf32>
    %130 = tpu.matmul %128, %129, %cst_68 {dimension_numbers = #tpu.dot_dimension_numbers<[1], [0], [0], [1], [0, 0, 1, 1], [], []>} : vector<8x64xbf16>, vector<64x32xbf16>, vector<8x32xf32> -> vector<8x32xf32>
    %c0_69 = arith.constant 0 : index
    %c0_70 = arith.constant 0 : index
    %131 = vector.load %arg17[%c0_69, %c0_70] : memref<1x32xf32, #tpu.memory_space<vmem>>, vector<1x32xf32>
    %132 = vector.broadcast %131 : vector<1x32xf32> to vector<8x32xf32>
    %133 = arith.addf %130, %132 : vector<8x32xf32>
    %c0_71 = arith.constant 0 : index
    %c0_72 = arith.constant 0 : index
    %c0_73 = arith.constant 0 : index
    %134 = vector.load %arg21[%c0_71, %c0_72, %c0_73] : memref<1x8x32xf32, #tpu.memory_space<vmem>>, vector<1x8x32xf32>
    %135 = vector.shape_cast %134 : vector<1x8x32xf32> to vector<8x32xf32>
    %136 = vector.shape_cast %133 : vector<8x32xf32> to vector<1x8x32xf32>
    tpu.vector_store %arg21[%c0_71, %c0_72, %c0_73], %136 {strides = array<i32>} : memref<1x8x32xf32, #tpu.memory_space<vmem>>, vector<1x8x32xf32>,
    %137 = arith.addf %119, %133 : vector<8x32xf32>
    %cst_74 = arith.constant dense<0.000000e+00> : vector<8xf32>
    %138 = vector.multi_reduction <add>, %137, %cst_74 [1] : vector<8x32xf32> to vector<8xf32>
    %139 = vector.shape_cast %138 : vector<8xf32> to vector<8x1xf32>
    %cst_75 = arith.constant 3.200000e+01 : f32
    %140 = vector.broadcast %cst_75 : f32 to vector<8x1xf32>
    %141 = arith.divf %139, %140 : vector<8x1xf32>
    %142 = vector.broadcast %141 : vector<8x1xf32> to vector<8x32xf32>
    %143 = arith.subf %137, %142 : vector<8x32xf32>
    %144 = arith.mulf %143, %143 : vector<8x32xf32>
    %cst_76 = arith.constant dense<0.000000e+00> : vector<8xf32>
    %145 = vector.multi_reduction <add>, %144, %cst_76 [1] : vector<8x32xf32> to vector<8xf32>
    %146 = vector.shape_cast %145 : vector<8xf32> to vector<8x1xf32>
    %cst_77 = arith.constant 3.200000e+01 : f32
    %147 = vector.broadcast %cst_77 : f32 to vector<8x1xf32>
    %148 = arith.divf %146, %147 : vector<8x1xf32>
    %cst_78 = arith.constant 9.99999974E-6 : f32
    %149 = vector.broadcast %cst_78 : f32 to vector<8x1xf32>
    %150 = arith.addf %148, %149 : vector<8x1xf32>
    %151 = math.rsqrt %150 : vector<8x1xf32>
    %152 = vector.broadcast %151 : vector<8x1xf32> to vector<8x32xf32>
    %153 = arith.mulf %143, %152 : vector<8x32xf32>
    %c0_79 = arith.constant 0 : index
    %c0_80 = arith.constant 0 : index
    %154 = vector.load %arg18[%c0_79, %c0_80] : memref<1x32xf32, #tpu.memory_space<vmem>>, vector<1x32xf32>
    %155 = vector.broadcast %154 : vector<1x32xf32> to vector<8x32xf32>
    %156 = arith.mulf %153, %155 : vector<8x32xf32>
    %c0_81 = arith.constant 0 : index
    %c0_82 = arith.constant 0 : index
    %157 = vector.load %arg19[%c0_81, %c0_82] : memref<1x32xf32, #tpu.memory_space<vmem>>, vector<1x32xf32>
    %158 = vector.broadcast %157 : vector<1x32xf32> to vector<8x32xf32>
    %159 = arith.addf %156, %158 : vector<8x32xf32>
    %c0_83 = arith.constant 0 : index
    %c0_84 = arith.constant 0 : index
    %c0_85 = arith.constant 0 : index
    %160 = vector.load %arg20[%c0_83, %c0_84, %c0_85] : memref<1x8x32xf32, #tpu.memory_space<vmem>>, vector<1x8x32xf32>
    %161 = vector.shape_cast %160 : vector<1x8x32xf32> to vector<8x32xf32>
    %162 = vector.shape_cast %159 : vector<8x32xf32> to vector<1x8x32xf32>
    tpu.vector_store %arg20[%c0_83, %c0_84, %c0_85], %162 {strides = array<i32>} : memref<1x8x32xf32, #tpu.memory_space<vmem>>, vector<1x8x32xf32>,
    return
  }
  func.func @transform_0(%arg0: i32, %arg1: i32) -> (i32, i32, i32) {
    %c0_i32 = arith.constant 0 : i32
    %c0_i32_0 = arith.constant 0 : i32
    return %arg0, %arg1, %c0_i32 : i32, i32, i32
  }
  func.func @transform_1(%arg0: i32, %arg1: i32) -> (i32, i32, i32) {
    %c0_i32 = arith.constant 0 : i32
    %c0_i32_0 = arith.constant 0 : i32
    %c0_i32_1 = arith.constant 0 : i32
    return %arg0, %c0_i32, %c0_i32_0 : i32, i32, i32
  }
  func.func @transform_2(%arg0: i32, %arg1: i32) -> (i32, i32) {
    %c0_i32 = arith.constant 0 : i32
    %c0_i32_0 = arith.constant 0 : i32
    %c0_i32_1 = arith.constant 0 : i32
    return %c0_i32, %c0_i32_0 : i32, i32
  }
  func.func @transform_3(%arg0: i32, %arg1: i32) -> (i32, i32) {
    %c0_i32 = arith.constant 0 : i32
    %c0_i32_0 = arith.constant 0 : i32
    %c0_i32_1 = arith.constant 0 : i32
    return %c0_i32, %c0_i32_0 : i32, i32
  }
  func.func @transform_4(%arg0: i32, %arg1: i32) -> (i32, i32) {
    %c0_i32 = arith.constant 0 : i32
    %c0_i32_0 = arith.constant 0 : i32
    %c0_i32_1 = arith.constant 0 : i32
    return %c0_i32, %c0_i32_0 : i32, i32
  }
  func.func @transform_5(%arg0: i32, %arg1: i32) -> (i32, i32) {
    %c0_i32 = arith.constant 0 : i32
    %c0_i32_0 = arith.constant 0 : i32
    %c0_i32_1 = arith.constant 0 : i32
    return %c0_i32, %c0_i32_0 : i32, i32
  }
  func.func @transform_6(%arg0: i32, %arg1: i32) -> (i32, i32) {
    %c0_i32 = arith.constant 0 : i32
    %c0_i32_0 = arith.constant 0 : i32
    %c0_i32_1 = arith.constant 0 : i32
    return %c0_i32, %c0_i32_0 : i32, i32
  }
  func.func @transform_7(%arg0: i32, %arg1: i32) -> (i32, i32) {
    %c0_i32 = arith.constant 0 : i32
    %c0_i32_0 = arith.constant 0 : i32
    %c0_i32_1 = arith.constant 0 : i32
    return %c0_i32, %c0_i32_0 : i32, i32
  }
  func.func @transform_8(%arg0: i32, %arg1: i32) -> (i32, i32) {
    %c0_i32 = arith.constant 0 : i32
    %c0_i32_0 = arith.constant 0 : i32
    %c0_i32_1 = arith.constant 0 : i32
    return %c0_i32, %c0_i32_0 : i32, i32
  }
  func.func @transform_9(%arg0: i32, %arg1: i32) -> (i32, i32) {
    %c0_i32 = arith.constant 0 : i32
    %c0_i32_0 = arith.constant 0 : i32
    %c0_i32_1 = arith.constant 0 : i32
    return %c0_i32, %c0_i32_0 : i32, i32
  }
  func.func @transform_10(%arg0: i32, %arg1: i32) -> (i32, i32) {
    %c0_i32 = arith.constant 0 : i32
    %c0_i32_0 = arith.constant 0 : i32
    %c0_i32_1 = arith.constant 0 : i32
    return %c0_i32, %c0_i32_0 : i32, i32
  }
  func.func @transform_11(%arg0: i32, %arg1: i32) -> (i32, i32) {
    %c0_i32 = arith.constant 0 : i32
    %c0_i32_0 = arith.constant 0 : i32
    %c0_i32_1 = arith.constant 0 : i32
    return %c0_i32, %c0_i32_0 : i32, i32
  }
  func.func @transform_12(%arg0: i32, %arg1: i32) -> (i32, i32) {
    %c0_i32 = arith.constant 0 : i32
    %c0_i32_0 = arith.constant 0 : i32
    %c0_i32_1 = arith.constant 0 : i32
    return %c0_i32, %c0_i32_0 : i32, i32
  }
  func.func @transform_13(%arg0: i32, %arg1: i32) -> (i32, i32) {
    %c0_i32 = arith.constant 0 : i32
    %c0_i32_0 = arith.constant 0 : i32
    %c0_i32_1 = arith.constant 0 : i32
    return %c0_i32, %c0_i32_0 : i32, i32
  }
  func.func @transform_14(%arg0: i32, %arg1: i32) -> (i32, i32) {
    %c0_i32 = arith.constant 0 : i32
    %c0_i32_0 = arith.constant 0 : i32
    %c0_i32_1 = arith.constant 0 : i32
    return %c0_i32, %c0_i32_0 : i32, i32
  }
  func.func @transform_15(%arg0: i32, %arg1: i32) -> (i32, i32) {
    %c0_i32 = arith.constant 0 : i32
    %c0_i32_0 = arith.constant 0 : i32
    %c0_i32_1 = arith.constant 0 : i32
    return %c0_i32, %c0_i32_0 : i32, i32
  }
  func.func @transform_16(%arg0: i32, %arg1: i32) -> (i32, i32) {
    %c0_i32 = arith.constant 0 : i32
    %c0_i32_0 = arith.constant 0 : i32
    %c0_i32_1 = arith.constant 0 : i32
    return %c0_i32, %c0_i32_0 : i32, i32
  }
  func.func @transform_17(%arg0: i32, %arg1: i32) -> (i32, i32) {
    %c0_i32 = arith.constant 0 : i32
    %c0_i32_0 = arith.constant 0 : i32
    %c0_i32_1 = arith.constant 0 : i32
    return %c0_i32, %c0_i32_0 : i32, i32
  }
  func.func @transform_18(%arg0: i32, %arg1: i32) -> (i32, i32, i32) {
    %c0_i32 = arith.constant 0 : i32
    %c0_i32_0 = arith.constant 0 : i32
    return %arg0, %arg1, %c0_i32 : i32, i32, i32
  }
  func.func @transform_19(%arg0: i32, %arg1: i32) -> (i32, i32, i32) {
    %c0_i32 = arith.constant 0 : i32
    %c0_i32_0 = arith.constant 0 : i32
    return %arg0, %arg1, %c0_i32 : i32, i32, i32
  }
}

</mosaic_0001>

<llo_original>
// kernel: tpu_custom_call.1
$region0: #{tpu_custom_call.1}
  #allocation0 [shape = 'u32[]', space=smem, size = 0x4, offset = 0x4, fixed_abs, tag = 'smem constant byte address 0x4 - core index']
  #allocation1 [shape = 'u32[72,128]{1,0:T(1,128)}', space=vmem, size = 0x9000, scoped, tag = 'internal scratch']
  #allocation2 [shape = 'bf16[8,32]{1,0:T(8,128)(2,1)}', space=vmem, size = 0x800, scoped, tag = 'scratch operand']
  #allocation3 [shape = 'bf16[8,32]{1,0:T(8,128)(2,1)}', space=vmem, size = 0x800, scoped, tag = 'scratch operand']
  #allocation4 [shape = 'bf16[8,32]{1,0:T(8,128)(2,1)}', space=vmem, size = 0x800, scoped, tag = 'scratch operand']
  %s0 = inlined_call_operand.vmem [shape: f32[2,8,32], index: 0, kind: input, shape index: {}]
  %s1 = inlined_call_operand.hbm [shape: bf16[2,8,32], index: 1, kind: input, shape index: {}]
  %s2 = inlined_call_operand.vmem [shape: bf16[32,32], index: 2, kind: input, shape index: {}]
  %s3 = inlined_call_operand.vmem [shape: f32[1,32], index: 3, kind: input, shape index: {}]
  %s4 = inlined_call_operand.vmem [shape: bf16[32,32], index: 4, kind: input, shape index: {}]
  %s5 = inlined_call_operand.vmem [shape: f32[1,32], index: 5, kind: input, shape index: {}]
  %s6 = inlined_call_operand.hbm [shape: bf16[32,32], index: 6, kind: input, shape index: {}]
  %s7 = inlined_call_operand.vmem [shape: f32[1,32], index: 7, kind: input, shape index: {}]
  %s8 = inlined_call_operand.hbm [shape: bf16[32,32], index: 8, kind: input, shape index: {}]
  %s9 = inlined_call_operand.vmem [shape: f32[1,32], index: 9, kind: input, shape index: {}]
  %s10 = inlined_call_operand.vmem [shape: f32[1,32], index: 10, kind: input, shape index: {}]
  %s11 = inlined_call_operand.vmem [shape: f32[1,32], index: 11, kind: input, shape index: {}]
  %s12 = inlined_call_operand.hbm [shape: bf16[32,64], index: 12, kind: input, shape index: {}]
  %s13 = inlined_call_operand.vmem [shape: f32[1,64], index: 13, kind: input, shape index: {}]
  %s14 = inlined_call_operand.vmem [shape: bf16[64,32], index: 14, kind: input, shape index: {}]
  %s15 = inlined_call_operand.vmem [shape: f32[1,32], index: 15, kind: input, shape index: {}]
  %s16 = inlined_call_operand.vmem [shape: f32[1,32], index: 16, kind: input, shape index: {}]
  %s17 = inlined_call_operand.vmem [shape: f32[1,32], index: 17, kind: input, shape index: {}]
  %s18 = inlined_call_operand.hbm [shape: f32[2,8,32], index: 18, kind: output, shape index: {0}]
  %s19 = inlined_call_operand.hbm [shape: f32[2,8,32], index: 19, kind: output, shape index: {1}]
  %20 = xla_tuple %s18, %s19
  %s21 = sld [smem:[#allocation0]]
  $region133: #{tpu_custom_call.1} parent=0
    _
  %s23 = ssub.s32 1, %s21
  %s24 = scalar_select 0, %s23, %s21
  $region1: #{tpu_custom_call.1} parent=0
    #allocation5 [shape = 'u8[4096]{0}', space=vmem, size = 0x1000, scoped, tag = 'input window, operand 1']
    #allocation6 [shape = 's32[2]{0}', space=sflag, size = 0x8, scoped, tag = 'scoped memory for tpu_custom_call.1']
    #allocation7 [shape = 's32[2]{0}', space=sflag, size = 0x8, scoped, tag = 'scoped memory for tpu_custom_call.1']
    #allocation8 [shape = 'u8[8192]{0}', space=vmem, size = 0x2000, scoped, tag = 'input window, operand 6, single buffered']
    #allocation9 [shape = 's32[1]{0}', space=sflag, size = 0x4, scoped, tag = 'scoped memory for tpu_custom_call.1']
    #allocation10 [shape = 'u8[8192]{0}', space=vmem, size = 0x2000, scoped, tag = 'input window, operand 8, single buffered']
    #allocation11 [shape = 'u8[8192]{0}', space=vmem, size = 0x2000, scoped, tag = 'input window, operand 12, single buffered']
    #allocation12 [shape = 's32[1]{0}', space=sflag, size = 0x4, scoped, tag = 'scoped memory for tpu_custom_call.1']
    #allocation13 [shape = 'u8[8192]{0}', space=vmem, size = 0x2000, scoped, tag = 'output window, operand 0']
    #allocation14 [shape = 'u8[8192]{0}', space=vmem, size = 0x2000, scoped, tag = 'output window, operand 1']
    #allocation15 [shape = 's32[2]{0}', space=sflag, size = 0x8, scoped, tag = 'scoped memory for tpu_custom_call.1']
    %25 = vsyncpa [#allocation6], 0
    %s26 = scalar_lea.sflag [#allocation6], 1
    %27 = vsyncpa %s26, 0
    %28 = vsyncpa [#allocation9], 0
    %29 = vsyncpa [#allocation12], 0
    %30 = vsyncpa [#allocation7], 0
    %s31 = scalar_lea.sflag [#allocation7], 1
    %32 = vsyncpa %s31, 0
    %33 = vsyncpa [#allocation15], 0
    %s34 = scalar_lea.sflag [#allocation15], 1
    %35 = vsyncpa %s34, 0
    loop: start=0, step=1, limit=4
    $region2: #{tpu_custom_call.1} parent=1 // loop_pre_header
      _
    $region3: #{tpu_custom_call.1} parent=1 // loop_header
      %s37 = sphi 0, %s41
      %p38 = scmp.ge.s32.totalorder %s37, 4
      %s44 = sphi 0, %s56
      %s45 = sphi 0, %s52
      %s46 = sphi 0, %s44
      %s47 = sphi 0, %s45
      %s48 = sphi 0, %s46
      %s49 = sphi 0, %s47
      %s61 = sphi 0, %s63
      %s64 = sphi 0, %s61
      %s65 = sphi 0, %s64
      %s81 = sphi 0, %s65
      %s87 = sphi 0, %s89
      %s90 = sphi 0, %s87
      %s91 = sphi 0, %s90
      %s107 = sphi 0, %s91
      %s111 = sphi 0, %s111
      %s113 = sphi 0, %s111
      %s114 = sphi 0, %s113
      %s128 = sphi 0, %s114
      %s132 = sphi 0, %s132
      %s134 = sphi 0, %s132
      %s135 = sphi 0, %s134
      %s149 = sphi 0, %s135
      %s153 = sphi 0, %s153
      %s155 = sphi 0, %s153
      %s156 = sphi 0, %s155
      %s170 = sphi 0, %s156
      %s174 = sphi 0, %s174
      %s176 = sphi 0, %s174
      %s177 = sphi 0, %s176
      %s191 = sphi 0, %s177
      %s195 = sphi 0, %s195
      %s197 = sphi 0, %s195
      %s198 = sphi 0, %s197
      %s212 = sphi 0, %s198
      %s216 = sphi 0, %s216
      %s218 = sphi 0, %s216
      %s219 = sphi 0, %s218
      %s233 = sphi 0, %s219
      %s237 = sphi 0, %s237
      %s239 = sphi 0, %s237
      %s240 = sphi 0, %s239
      %s254 = sphi 0, %s240
      %s258 = sphi 0, %s258
      %s260 = sphi 0, %s258
      %s261 = sphi 0, %s260
      %s275 = sphi 0, %s261
      %s279 = sphi 0, %s279
      %s281 = sphi 0, %s279
      %s282 = sphi 0, %s281
      %s296 = sphi 0, %s282
      %s300 = sphi 0, %s300
      %s302 = sphi 0, %s300
      %s303 = sphi 0, %s302
      %s317 = sphi 0, %s303
      %s321 = sphi 0, %s321
      %s323 = sphi 0, %s321
      %s324 = sphi 0, %s323
      %s338 = sphi 0, %s324
      %s342 = sphi 0, %s342
      %s344 = sphi 0, %s342
      %s345 = sphi 0, %s344
      %s359 = sphi 0, %s345
      %s363 = sphi 0, %s363
      %s365 = sphi 0, %s363
      %s366 = sphi 0, %s365
      %s380 = sphi 0, %s366
      %s384 = sphi 0, %s384
      %s386 = sphi 0, %s384
      %s387 = sphi 0, %s386
      %s401 = sphi 0, %s387
      %s405 = sphi 0, %s405
      %s407 = sphi 0, %s405
      %s408 = sphi 0, %s407
      %s422 = sphi 0, %s408
      %s426 = sphi 0, %s426
      %s428 = sphi 0, %s426
      %s429 = sphi 0, %s428
      %s443 = sphi 0, %s429
      %s451 = sphi 0, %s453
      %s454 = sphi 0, %s451
      %s455 = sphi 0, %s454
      %s471 = sphi 0, %s455
      %s479 = sphi 0, %s481
      %s482 = sphi 0, %s479
      %s483 = sphi 0, %s482
      %s499 = sphi 0, %s483
    $region4: #{tpu_custom_call.1} parent=1 // loop_header_branch
      %40 = sbr.rel (%p38) target = $region8
    $region5: #{tpu_custom_call.1} parent=1 // loop_body
      %s42 = ssub.s32 %s37, 1
      %s43 = ssub.s32 %s37, 2
      %s50 = sadd.s32 1, %s45
      %p51 = scmp.ge.s32.totalorder %s50, 1
      %s52 = scalar_select %p51, 0, %s50
      %s53 = sadd.s32 1, %s44
      %s54 = scalar_select %p51, %s53, %s44
      %p55 = scmp.ge.s32.totalorder %s54, 2
      %s56 = scalar_select %p55, 0, %s54
      %s57 = ssub.s32 %s44, %s56
      %s58 = ssub.s32 %s45, %s52
      %s59 = sor.u32 %s57, %s58
      %p60 = scmp.eq.s32.totalorder %s59, 0
      %s62 = sadd.s32 %s61, 1
      %s63 = scalar_select %p60, %s61, %s62
      %p66 = pneg %p60
      %p67 = scmp.eq.s32.totalorder %s37, 1
      %p68 = por %p66, %p67
      %p69 = scmp.ne.s32.totalorder %s61, %s64
      %p70 = scmp.eq.s32.totalorder %s37, 0
      %p71 = por %p69, %p70
      %p72 = scmp.ne.s32.totalorder %s61, %s64
      %p73 = scmp.eq.s32.totalorder %s42, 1
      %p74 = por %p72, %p73
      %p75 = scmp.ne.s32.totalorder %s64, %s65
      %p76 = scmp.eq.s32.totalorder %s42, 0
      %p77 = por %p75, %p76
      %p78 = scmp.ne.s32.totalorder %s64, %s65
      %p79 = scmp.eq.s32.totalorder %s43, 1
      %p80 = por %p78, %p79
      %p82 = scmp.ne.s32.totalorder %s65, %s81
      %p83 = scmp.eq.s32.totalorder %s43, 0
      %p84 = por %p82, %p83
      %s85 = ssub.s32 %s44, %s56
      %p86 = scmp.eq.s32.totalorder %s85, 0
      %s88 = sadd.s32 %s87, 1
      %s89 = scalar_select %p86, %s87, %s88
      %p92 = pneg %p86
      %p93 = scmp.eq.s32.totalorder %s37, 1
      %p94 = por %p92, %p93
      %p95 = scmp.ne.s32.totalorder %s87, %s90
      %p96 = scmp.eq.s32.totalorder %s37, 0
      %p97 = por %p95, %p96
      %p98 = scmp.ne.s32.totalorder %s87, %s90
      %p99 = scmp.eq.s32.totalorder %s42, 1
      %p100 = por %p98, %p99
      %p101 = scmp.ne.s32.totalorder %s90, %s91
      %p102 = scmp.eq.s32.totalorder %s42, 0
      %p103 = por %p101, %p102
      %p104 = scmp.ne.s32.totalorder %s90, %s91
      %p105 = scmp.eq.s32.totalorder %s43, 1
      %p106 = por %p104, %p105
      %p108 = scmp.ne.s32.totalorder %s91, %s107
      %p109 = scmp.eq.s32.totalorder %s43, 0
      %p110 = por %p108, %p109
      %s112 = sadd.s32 %s111, 1
      %p115 = scmp.eq.s32.totalorder %s37, 1
      %p116 = scmp.ne.s32.totalorder %s111, %s113
      %p117 = scmp.eq.s32.totalorder %s37, 0
      %p118 = por %p116, %p117
      %p119 = scmp.ne.s32.totalorder %s111, %s113
      %p120 = scmp.eq.s32.totalorder %s42, 1
      %p121 = por %p119, %p120
      %p122 = scmp.ne.s32.totalorder %s113, %s114
      %p123 = scmp.eq.s32.totalorder %s42, 0
      %p124 = por %p122, %p123
      %p125 = scmp.ne.s32.totalorder %s113, %s114
      %p126 = scmp.eq.s32.totalorder %s43, 1
      %p127 = por %p125, %p126
      %p129 = scmp.ne.s32.totalorder %s114, %s128
      %p130 = scmp.eq.s32.totalorder %s43, 0
      %p131 = por %p129, %p130
      %s133 = sadd.s32 %s132, 1
      %p136 = scmp.eq.s32.totalorder %s37, 1
      %p137 = scmp.ne.s32.totalorder %s132, %s134
      %p138 = scmp.eq.s32.totalorder %s37, 0
      %p139 = por %p137, %p138
      %p140 = scmp.ne.s32.totalorder %s132, %s134
      %p141 = scmp.eq.s32.totalorder %s42, 1
      %p142 = por %p140, %p141
      %p143 = scmp.ne.s32.totalorder %s134, %s135
      %p144 = scmp.eq.s32.totalorder %s42, 0
      %p145 = por %p143, %p144
      %p146 = scmp.ne.s32.totalorder %s134, %s135
      %p147 = scmp.eq.s32.totalorder %s43, 1
      %p148 = por %p146, %p147
      %p150 = scmp.ne.s32.totalorder %s135, %s149
      %p151 = scmp.eq.s32.totalorder %s43, 0
      %p152 = por %p150, %p151
      %s154 = sadd.s32 %s153, 1
      %p157 = scmp.eq.s32.totalorder %s37, 1
      %p158 = scmp.ne.s32.totalorder %s153, %s155
      %p159 = scmp.eq.s32.totalorder %s37, 0
      %p160 = por %p158, %p159
      %p161 = scmp.ne.s32.totalorder %s153, %s155
      %p162 = scmp.eq.s32.totalorder %s42, 1
      %p163 = por %p161, %p162
      %p164 = scmp.ne.s32.totalorder %s155, %s156
      %p165 = scmp.eq.s32.totalorder %s42, 0
      %p166 = por %p164, %p165
      %p167 = scmp.ne.s32.totalorder %s155, %s156
      %p168 = scmp.eq.s32.totalorder %s43, 1
      %p169 = por %p167, %p168
      %p171 = scmp.ne.s32.totalorder %s156, %s170
      %p172 = scmp.eq.s32.totalorder %s43, 0
      %p173 = por %p171, %p172
      %s175 = sadd.s32 %s174, 1
      %p178 = scmp.eq.s32.totalorder %s37, 1
      %p179 = scmp.ne.s32.totalorder %s174, %s176
      %p180 = scmp.eq.s32.totalorder %s37, 0
      %p181 = por %p179, %p180
      %p182 = scmp.ne.s32.totalorder %s174, %s176
      %p183 = scmp.eq.s32.totalorder %s42, 1
      %p184 = por %p182, %p183
      %p185 = scmp.ne.s32.totalorder %s176, %s177
      %p186 = scmp.eq.s32.totalorder %s42, 0
      %p187 = por %p185, %p186
      %p188 = scmp.ne.s32.totalorder %s176, %s177
      %p189 = scmp.eq.s32.totalorder %s43, 1
      %p190 = por %p188, %p189
      %p192 = scmp.ne.s32.totalorder %s177, %s191
      %p193 = scmp.eq.s32.totalorder %s43, 0
      %p194 = por %p192, %p193
      %s196 = sadd.s32 %s195, 1
      %p199 = scmp.eq.s32.totalorder %s37, 1
      %p200 = scmp.ne.s32.totalorder %s195, %s197
      %p201 = scmp.eq.s32.totalorder %s37, 0
      %p202 = por %p200, %p201
      %p203 = scmp.ne.s32.totalorder %s195, %s197
      %p204 = scmp.eq.s32.totalorder %s42, 1
      %p205 = por %p203, %p204
      %p206 = scmp.ne.s32.totalorder %s197, %s198
      %p207 = scmp.eq.s32.totalorder %s42, 0
      %p208 = por %p206, %p207
      %p209 = scmp.ne.s32.totalorder %s197, %s198
      %p210 = scmp.eq.s32.totalorder %s43, 1
      %p211 = por %p209, %p210
      %p213 = scmp.ne.s32.totalorder %s198, %s212
      %p214 = scmp.eq.s32.totalorder %s43, 0
      %p215 = por %p213, %p214
      %s217 = sadd.s32 %s216, 1
      %p220 = scmp.eq.s32.totalorder %s37, 1
      %p221 = scmp.ne.s32.totalorder %s216, %s218
      %p222 = scmp.eq.s32.totalorder %s37, 0
      %p223 = por %p221, %p222
      %p224 = scmp.ne.s32.totalorder %s216, %s218
      %p225 = scmp.eq.s32.totalorder %s42, 1
      %p226 = por %p224, %p225
      %p227 = scmp.ne.s32.totalorder %s218, %s219
      %p228 = scmp.eq.s32.totalorder %s42, 0
      %p229 = por %p227, %p228
      %p230 = scmp.ne.s32.totalorder %s218, %s219
      %p231 = scmp.eq.s32.totalorder %s43, 1
      %p232 = por %p230, %p231
      %p234 = scmp.ne.s32.totalorder %s219, %s233
      %p235 = scmp.eq.s32.totalorder %s43, 0
      %p236 = por %p234, %p235
      %s238 = sadd.s32 %s237, 1
      %p241 = scmp.eq.s32.totalorder %s37, 1
      %p242 = scmp.ne.s32.totalorder %s237, %s239
      %p243 = scmp.eq.s32.totalorder %s37, 0
      %p244 = por %p242, %p243
      %p245 = scmp.ne.s32.totalorder %s237, %s239
      %p246 = scmp.eq.s32.totalorder %s42, 1
      %p247 = por %p245, %p246
      %p248 = scmp.ne.s32.totalorder %s239, %s240
      %p249 = scmp.eq.s32.totalorder %s42, 0
      %p250 = por %p248, %p249
      %p251 = scmp.ne.s32.totalorder %s239, %s240
      %p252 = scmp.eq.s32.totalorder %s43, 1
      %p253 = por %p251, %p252
      %p255 = scmp.ne.s32.totalorder %s240, %s254
      %p256 = scmp.eq.s32.totalorder %s43, 0
      %p257 = por %p255, %p256
      %s259 = sadd.s32 %s258, 1
      %p262 = scmp.eq.s32.totalorder %s37, 1
      %p263 = scmp.ne.s32.totalorder %s258, %s260
      %p264 = scmp.eq.s32.totalorder %s37, 0
      %p265 = por %p263, %p264
      %p266 = scmp.ne.s32.totalorder %s258, %s260
      %p267 = scmp.eq.s32.totalorder %s42, 1
      %p268 = por %p266, %p267
      %p269 = scmp.ne.s32.totalorder %s260, %s261
      %p270 = scmp.eq.s32.totalorder %s42, 0
      %p271 = por %p269, %p270
      %p272 = scmp.ne.s32.totalorder %s260, %s261
      %p273 = scmp.eq.s32.totalorder %s43, 1
      %p274 = por %p272, %p273
      %p276 = scmp.ne.s32.totalorder %s261, %s275
      %p277 = scmp.eq.s32.totalorder %s43, 0
      %p278 = por %p276, %p277
      %s280 = sadd.s32 %s279, 1
      %p283 = scmp.eq.s32.totalorder %s37, 1
      %p284 = scmp.ne.s32.totalorder %s279, %s281
      %p285 = scmp.eq.s32.totalorder %s37, 0
      %p286 = por %p284, %p285
      %p287 = scmp.ne.s32.totalorder %s279, %s281
      %p288 = scmp.eq.s32.totalorder %s42, 1
      %p289 = por %p287, %p288
      %p290 = scmp.ne.s32.totalorder %s281, %s282
      %p291 = scmp.eq.s32.totalorder %s42, 0
      %p292 = por %p290, %p291
      %p293 = scmp.ne.s32.totalorder %s281, %s282
      %p294 = scmp.eq.s32.totalorder %s43, 1
      %p295 = por %p293, %p294
      %p297 = scmp.ne.s32.totalorder %s282, %s296
      %p298 = scmp.eq.s32.totalorder %s43, 0
      %p299 = por %p297, %p298
      %s301 = sadd.s32 %s300, 1
      %p304 = scmp.eq.s32.totalorder %s37, 1
      %p305 = scmp.ne.s32.totalorder %s300, %s302
      %p306 = scmp.eq.s32.totalorder %s37, 0
      %p307 = por %p305, %p306
      %p308 = scmp.ne.s32.totalorder %s300, %s302
      %p309 = scmp.eq.s32.totalorder %s42, 1
      %p310 = por %p308, %p309
      %p311 = scmp.ne.s32.totalorder %s302, %s303
      %p312 = scmp.eq.s32.totalorder %s42, 0
      %p313 = por %p311, %p312
      %p314 = scmp.ne.s32.totalorder %s302, %s303
      %p315 = scmp.eq.s32.totalorder %s43, 1
      %p316 = por %p314, %p315
      %p318 = scmp.ne.s32.totalorder %s303, %s317
      %p319 = scmp.eq.s32.totalorder %s43, 0
      %p320 = por %p318, %p319
      %s322 = sadd.s32 %s321, 1
      %p325 = scmp.eq.s32.totalorder %s37, 1
      %p326 = scmp.ne.s32.totalorder %s321, %s323
      %p327 = scmp.eq.s32.totalorder %s37, 0
      %p328 = por %p326, %p327
      %p329 = scmp.ne.s32.totalorder %s321, %s323
      %p330 = scmp.eq.s32.totalorder %s42, 1
      %p331 = por %p329, %p330
      %p332 = scmp.ne.s32.totalorder %s323, %s324
      %p333 = scmp.eq.s32.totalorder %s42, 0
      %p334 = por %p332, %p333
      %p335 = scmp.ne.s32.totalorder %s323, %s324
      %p336 = scmp.eq.s32.totalorder %s43, 1
      %p337 = por %p335, %p336
      %p339 = scmp.ne.s32.totalorder %s324, %s338
      %p340 = scmp.eq.s32.totalorder %s43, 0
      %p341 = por %p339, %p340
      %s343 = sadd.s32 %s342, 1
      %p346 = scmp.eq.s32.totalorder %s37, 1
      %p347 = scmp.ne.s32.totalorder %s342, %s344
      %p348 = scmp.eq.s32.totalorder %s37, 0
      %p349 = por %p347, %p348
      %p350 = scmp.ne.s32.totalorder %s342, %s344
      %p351 = scmp.eq.s32.totalorder %s42, 1
      %p352 = por %p350, %p351
      %p353 = scmp.ne.s32.totalorder %s344, %s345
      %p354 = scmp.eq.s32.totalorder %s42, 0
      %p355 = por %p353, %p354
      %p356 = scmp.ne.s32.totalorder %s344, %s345
      %p357 = scmp.eq.s32.totalorder %s43, 1
      %p358 = por %p356, %p357
      %p360 = scmp.ne.s32.totalorder %s345, %s359
      %p361 = scmp.eq.s32.totalorder %s43, 0
      %p362 = por %p360, %p361
      %s364 = sadd.s32 %s363, 1
      %p367 = scmp.eq.s32.totalorder %s37, 1
      %p368 = scmp.ne.s32.totalorder %s363, %s365
      %p369 = scmp.eq.s32.totalorder %s37, 0
      %p370 = por %p368, %p369
      %p371 = scmp.ne.s32.totalorder %s363, %s365
      %p372 = scmp.eq.s32.totalorder %s42, 1
      %p373 = por %p371, %p372
      %p374 = scmp.ne.s32.totalorder %s365, %s366
      %p375 = scmp.eq.s32.totalorder %s42, 0
      %p376 = por %p374, %p375
      %p377 = scmp.ne.s32.totalorder %s365, %s366
      %p378 = scmp.eq.s32.totalorder %s43, 1
      %p379 = por %p377, %p378
      %p381 = scmp.ne.s32.totalorder %s366, %s380
      %p382 = scmp.eq.s32.totalorder %s43, 0
      %p383 = por %p381, %p382
      %s385 = sadd.s32 %s384, 1
      %p388 = scmp.eq.s32.totalorder %s37, 1
      %p389 = scmp.ne.s32.totalorder %s384, %s386
      %p390 = scmp.eq.s32.totalorder %s37, 0
      %p391 = por %p389, %p390
      %p392 = scmp.ne.s32.totalorder %s384, %s386
      %p393 = scmp.eq.s32.totalorder %s42, 1
      %p394 = por %p392, %p393
      %p395 = scmp.ne.s32.totalorder %s386, %s387
      %p396 = scmp.eq.s32.totalorder %s42, 0
      %p397 = por %p395, %p396
      %p398 = scmp.ne.s32.totalorder %s386, %s387
      %p399 = scmp.eq.s32.totalorder %s43, 1
      %p400 = por %p398, %p399
      %p402 = scmp.ne.s32.totalorder %s387, %s401
      %p403 = scmp.eq.s32.totalorder %s43, 0
      %p404 = por %p402, %p403
      %s406 = sadd.s32 %s405, 1
      %p409 = scmp.eq.s32.totalorder %s37, 1
      %p410 = scmp.ne.s32.totalorder %s405, %s407
      %p411 = scmp.eq.s32.totalorder %s37, 0
      %p412 = por %p410, %p411
      %p413 = scmp.ne.s32.totalorder %s405, %s407
      %p414 = scmp.eq.s32.totalorder %s42, 1
      %p415 = por %p413, %p414
      %p416 = scmp.ne.s32.totalorder %s407, %s408
      %p417 = scmp.eq.s32.totalorder %s42, 0
      %p418 = por %p416, %p417
      %p419 = scmp.ne.s32.totalorder %s407, %s408
      %p420 = scmp.eq.s32.totalorder %s43, 1
      %p421 = por %p419, %p420
      %p423 = scmp.ne.s32.totalorder %s408, %s422
      %p424 = scmp.eq.s32.totalorder %s43, 0
      %p425 = por %p423, %p424
      %s427 = sadd.s32 %s426, 1
      %p430 = scmp.eq.s32.totalorder %s37, 1
      %p431 = scmp.ne.s32.totalorder %s426, %s428
      %p432 = scmp.eq.s32.totalorder %s37, 0
      %p433 = por %p431, %p432
      %p434 = scmp.ne.s32.totalorder %s426, %s428
      %p435 = scmp.eq.s32.totalorder %s42, 1
      %p436 = por %p434, %p435
      %p437 = scmp.ne.s32.totalorder %s428, %s429
      %p438 = scmp.eq.s32.totalorder %s42, 0
      %p439 = por %p437, %p438
      %p440 = scmp.ne.s32.totalorder %s428, %s429
      %p441 = scmp.eq.s32.totalorder %s43, 1
      %p442 = por %p440, %p441
      %p444 = scmp.ne.s32.totalorder %s429, %s443
      %p445 = scmp.eq.s32.totalorder %s43, 0
      %p446 = por %p444, %p445
      %s447 = ssub.s32 %s44, %s56
      %s448 = ssub.s32 %s45, %s52
      %s449 = sor.u32 %s447, %s448
      %p450 = scmp.eq.s32.totalorder %s449, 0
      %s452 = sadd.s32 %s451, 1
      %s453 = scalar_select %p450, %s451, %s452
      %p456 = pneg %p450
      %p457 = scmp.eq.s32.totalorder %s37, 1
      %p458 = por %p456, %p457
      %p459 = scmp.ne.s32.totalorder %s451, %s454
      %p460 = scmp.eq.s32.totalorder %s37, 0
      %p461 = por %p459, %p460
      %p462 = scmp.ne.s32.totalorder %s451, %s454
      %p463 = scmp.eq.s32.totalorder %s42, 1
      %p464 = por %p462, %p463
      %p465 = scmp.ne.s32.totalorder %s454, %s455
      %p466 = scmp.eq.s32.totalorder %s42, 0
      %p467 = por %p465, %p466
      %p468 = scmp.ne.s32.totalorder %s454, %s455
      %p469 = scmp.eq.s32.totalorder %s43, 1
      %p470 = por %p468, %p469
      %p472 = scmp.ne.s32.totalorder %s455, %s471
      %p473 = scmp.eq.s32.totalorder %s43, 0
      %p474 = por %p472, %p473
      %s475 = ssub.s32 %s44, %s56
      %s476 = ssub.s32 %s45, %s52
      %s477 = sor.u32 %s475, %s476
      %p478 = scmp.eq.s32.totalorder %s477, 0
      %s480 = sadd.s32 %s479, 1
      %s481 = scalar_select %p478, %s479, %s480
      %p484 = pneg %p478
      %p485 = scmp.eq.s32.totalorder %s37, 1
      %p486 = por %p484, %p485
      %p487 = scmp.ne.s32.totalorder %s479, %s482
      %p488 = scmp.eq.s32.totalorder %s37, 0
      %p489 = por %p487, %p488
      %p490 = scmp.ne.s32.totalorder %s479, %s482
      %p491 = scmp.eq.s32.totalorder %s42, 1
      %p492 = por %p490, %p491
      %p493 = scmp.ne.s32.totalorder %s482, %s483
      %p494 = scmp.eq.s32.totalorder %s42, 0
      %p495 = por %p493, %p494
      %p496 = scmp.ne.s32.totalorder %s482, %s483
      %p497 = scmp.eq.s32.totalorder %s43, 1
      %p498 = por %p496, %p497
      %p500 = scmp.ne.s32.totalorder %s483, %s499
      %p501 = scmp.eq.s32.totalorder %s43, 0
      %p502 = por %p500, %p501
      %p503 = scmp.le.s32.totalorder 1, %s37
      %p504 = scmp.lt.s32.totalorder %s37, 3
      %p505 = pnand %p503, %p504
      %p506 = pneg %p505
      // Predicated region
      $region9: #{tpu_custom_call.1} parent=5 // pred_check
        _
      $region10: #{tpu_custom_call.1} parent=5 // pred_check_branch
        %508 = sbr.rel (%p505) target = $region12
      $region11: #{tpu_custom_call.1} parent=5 // pred_region
        %s509 = ssub.s32 %s37, 1
        // Predicated region
        $region13: #{tpu_custom_call.1} parent=11 // pred_check
          %p510 = pneg %p124
        $region14: #{tpu_custom_call.1} parent=11 // pred_check_branch
          %512 = sbr.rel (%p510) target = $region16
        $region15: #{tpu_custom_call.1} parent=11 // pred_region
          _
        $region16: #{tpu_custom_call.1} parent=11 // pred_fallthru
          _
        // Predicated region
        $region17: #{tpu_custom_call.1} parent=11 // pred_check
          %p513 = pneg %p145
        $region18: #{tpu_custom_call.1} parent=11 // pred_check_branch
          %515 = sbr.rel (%p513) target = $region20
        $region19: #{tpu_custom_call.1} parent=11 // pred_region
          _
        $region20: #{tpu_custom_call.1} parent=11 // pred_fallthru
          _
        // Predicated region
        $region21: #{tpu_custom_call.1} parent=11 // pred_check
          %p516 = pneg %p166
        $region22: #{tpu_custom_call.1} parent=11 // pred_check_branch
          %518 = sbr.rel (%p516) target = $region24
        $region23: #{tpu_custom_call.1} parent=11 // pred_region
          _
        $region24: #{tpu_custom_call.1} parent=11 // pred_fallthru
          _
        // Predicated region
        $region25: #{tpu_custom_call.1} parent=11 // pred_check
          %p519 = pneg %p187
        $region26: #{tpu_custom_call.1} parent=11 // pred_check_branch
          %521 = sbr.rel (%p519) target = $region28
        $region27: #{tpu_custom_call.1} parent=11 // pred_region
          _
        $region28: #{tpu_custom_call.1} parent=11 // pred_fallthru
          _
        // Predicated region
        $region29: #{tpu_custom_call.1} parent=11 // pred_check
          %p522 = pneg %p208
        $region30: #{tpu_custom_call.1} parent=11 // pred_check_branch
          %524 = sbr.rel (%p522) target = $region32
        $region31: #{tpu_custom_call.1} parent=11 // pred_region
          %526 = vsyncadd [#allocation9], 0
          %s527 = sshll.u32 %s6, 4
          %s528 = int_to_ptr.hbm [resolvable:$true] %s527
          %s529 = sshll.u32 [#allocation8], 4
          %s530 = int_to_ptr.vmem [resolvable:$true] %s529
          %535 = dma.hbm_to_vmem [thread:$0]  %s528, 256, %s530, [#allocation9], 64, 64, 4
        $region32: #{tpu_custom_call.1} parent=11 // pred_fallthru
          _
        // Predicated region
        $region33: #{tpu_custom_call.1} parent=11 // pred_check
          %p536 = pneg %p229
        $region34: #{tpu_custom_call.1} parent=11 // pred_check_branch
          %538 = sbr.rel (%p536) target = $region36
        $region35: #{tpu_custom_call.1} parent=11 // pred_region
          _
        $region36: #{tpu_custom_call.1} parent=11 // pred_fallthru
          _
        // Predicated region
        $region37: #{tpu_custom_call.1} parent=11 // pred_check
          %p539 = pneg %p250
        $region38: #{tpu_custom_call.1} parent=11 // pred_check_branch
          %541 = sbr.rel (%p539) target = $region40
        $region39: #{tpu_custom_call.1} parent=11 // pred_region
          %543 = vsyncadd [#allocation9], 0
          %s544 = sshll.u32 %s8, 4
          %s545 = int_to_ptr.hbm [resolvable:$true] %s544
          %s546 = sshll.u32 [#allocation10], 4
          %s547 = int_to_ptr.vmem [resolvable:$true] %s546
          %552 = dma.hbm_to_vmem [thread:$0]  %s545, 256, %s547, [#allocation9], 64, 64, 4
        $region40: #{tpu_custom_call.1} parent=11 // pred_fallthru
          _
        // Predicated region
        $region41: #{tpu_custom_call.1} parent=11 // pred_check
          %p553 = pneg %p271
        $region42: #{tpu_custom_call.1} parent=11 // pred_check_branch
          %555 = sbr.rel (%p553) target = $region44
        $region43: #{tpu_custom_call.1} parent=11 // pred_region
          _
        $region44: #{tpu_custom_call.1} parent=11 // pred_fallthru
          _
        // Predicated region
        $region45: #{tpu_custom_call.1} parent=11 // pred_check
          %p556 = pneg %p292
        $region46: #{tpu_custom_call.1} parent=11 // pred_check_branch
          %558 = sbr.rel (%p556) target = $region48
        $region47: #{tpu_custom_call.1} parent=11 // pred_region
          _
        $region48: #{tpu_custom_call.1} parent=11 // pred_fallthru
          _
        // Predicated region
        $region49: #{tpu_custom_call.1} parent=11 // pred_check
          %p559 = pneg %p313
        $region50: #{tpu_custom_call.1} parent=11 // pred_check_branch
          %561 = sbr.rel (%p559) target = $region52
        $region51: #{tpu_custom_call.1} parent=11 // pred_region
          _
        $region52: #{tpu_custom_call.1} parent=11 // pred_fallthru
          _
        // Predicated region
        $region53: #{tpu_custom_call.1} parent=11 // pred_check
          %p562 = pneg %p334
        $region54: #{tpu_custom_call.1} parent=11 // pred_check_branch
          %564 = sbr.rel (%p562) target = $region56
        $region55: #{tpu_custom_call.1} parent=11 // pred_region
          %566 = vsyncadd [#allocation12], 0
          %s567 = sshll.u32 %s12, 4
          %s568 = int_to_ptr.hbm [resolvable:$true] %s567
          %s569 = sshll.u32 [#allocation11], 4
          %s570 = int_to_ptr.vmem [resolvable:$true] %s569
          %575 = dma.hbm_to_vmem [thread:$0]  %s568, 256, %s570, [#allocation12], 64, 64, 4
        $region56: #{tpu_custom_call.1} parent=11 // pred_fallthru
          _
        // Predicated region
        $region57: #{tpu_custom_call.1} parent=11 // pred_check
          %p576 = pneg %p355
        $region58: #{tpu_custom_call.1} parent=11 // pred_check_branch
          %578 = sbr.rel (%p576) target = $region60
        $region59: #{tpu_custom_call.1} parent=11 // pred_region
          _
        $region60: #{tpu_custom_call.1} parent=11 // pred_fallthru
          _
        // Predicated region
        $region61: #{tpu_custom_call.1} parent=11 // pred_check
          %p579 = pneg %p376
        $region62: #{tpu_custom_call.1} parent=11 // pred_check_branch
          %581 = sbr.rel (%p579) target = $region64
        $region63: #{tpu_custom_call.1} parent=11 // pred_region
          _
        $region64: #{tpu_custom_call.1} parent=11 // pred_fallthru
          _
        // Predicated region
        $region65: #{tpu_custom_call.1} parent=11 // pred_check
          %p582 = pneg %p397
        $region66: #{tpu_custom_call.1} parent=11 // pred_check_branch
          %584 = sbr.rel (%p582) target = $region68
        $region67: #{tpu_custom_call.1} parent=11 // pred_region
          _
        $region68: #{tpu_custom_call.1} parent=11 // pred_fallthru
          _
        // Predicated region
        $region69: #{tpu_custom_call.1} parent=11 // pred_check
          %p585 = pneg %p418
        $region70: #{tpu_custom_call.1} parent=11 // pred_check_branch
          %587 = sbr.rel (%p585) target = $region72
        $region71: #{tpu_custom_call.1} parent=11 // pred_region
          _
        $region72: #{tpu_custom_call.1} parent=11 // pred_fallthru
          _
        // Predicated region
        $region73: #{tpu_custom_call.1} parent=11 // pred_check
          %p588 = pneg %p439
        $region74: #{tpu_custom_call.1} parent=11 // pred_check_branch
          %590 = sbr.rel (%p588) target = $region76
        $region75: #{tpu_custom_call.1} parent=11 // pred_region
          _
        $region76: #{tpu_custom_call.1} parent=11 // pred_fallthru
          _
      $region12: #{tpu_custom_call.1} parent=5 // pred_fallthru
        _
      %p591 = scmp.lt.s32.totalorder %s37, 2
      // Predicated region
      $region77: #{tpu_custom_call.1} parent=5 // pred_check
        %p592 = pneg %p591
      $region78: #{tpu_custom_call.1} parent=5 // pred_check_branch
        %594 = sbr.rel (%p592) target = $region80
      $region79: #{tpu_custom_call.1} parent=5 // pred_region
        // Predicated region
        $region81: #{tpu_custom_call.1} parent=79 // pred_check
          %p595 = pneg %p71
        $region82: #{tpu_custom_call.1} parent=79 // pred_check_branch
          %597 = sbr.rel (%p595) target = $region84
        $region83: #{tpu_custom_call.1} parent=79 // pred_region
          %p598 = scmp.lt.s32.totalorder %s44, 1
          %s599 = scalar_select %p598, %s44, 1
          %p600 = scmp.lt.s32.totalorder %s45, 0
          %s601 = scalar_select %p600, %s45, 0
          %s602 = sadd.s32 %s601, %s599
          %s603 = smul.addr %s602, 8
          %s604 = scalar_lea.vmem %s0, %s603
        $region84: #{tpu_custom_call.1} parent=79 // pred_fallthru
          _
        // Predicated region
        $region85: #{tpu_custom_call.1} parent=79 // pred_check
          %p605 = pneg %p97
        $region86: #{tpu_custom_call.1} parent=79 // pred_check_branch
          %607 = sbr.rel (%p605) target = $region88
        $region87: #{tpu_custom_call.1} parent=79 // pred_region
          %s608 = sand.u32 %s87, 1
          %s609 = scalar_lea.sflag [#allocation6], %s608
          %s610 = sand.u32 %s87, 1
          %s611 = smul.addr %s610, 4
          %s612 = scalar_lea.vmem [#allocation5], %s611
          %614 = vsyncadd %s609, 0
          %s615 = smul.addr %s44, 4
          %s616 = scalar_lea.hbm %s1, %s615
          %s618 = sshll.u32 %s616, 4
          %s619 = int_to_ptr.hbm [resolvable:$true] %s618
          %s620 = sshll.u32 %s612, 4
          %s621 = int_to_ptr.vmem [resolvable:$true] %s620
          %623 = dma.hbm_to_vmem [thread:$0]  %s619, 64, %s621, %s609
        $region88: #{tpu_custom_call.1} parent=79 // pred_fallthru
          _
      $region80: #{tpu_custom_call.1} parent=5 // pred_fallthru
        _
      %p624 = scmp.le.s32.totalorder 1, %s37
      %p625 = scmp.lt.s32.totalorder %s37, 3
      %p626 = pnand %p624, %p625
      %p627 = pneg %p626
      // Predicated region
      $region89: #{tpu_custom_call.1} parent=5 // pred_check
        _
      $region90: #{tpu_custom_call.1} parent=5 // pred_check_branch
        %629 = sbr.rel (%p626) target = $region92
      $region91: #{tpu_custom_call.1} parent=5 // pred_region
        %s630 = ssub.s32 %s37, 1
        %s631 = sand.u32 %s90, 1
        %s632 = scalar_lea.sflag [#allocation6], %s631
        %s633 = sand.u32 %s90, 1
        %s634 = smul.addr %s633, 4
        %s635 = scalar_lea.vmem [#allocation5], %s634
        // Predicated region
        $region93: #{tpu_custom_call.1} parent=91 // pred_check
          %p636 = pneg %p103
        $region94: #{tpu_custom_call.1} parent=91 // pred_check_branch
          %638 = sbr.rel (%p636) target = $region96
        $region95: #{tpu_custom_call.1} parent=91 // pred_region
          %640 = dma.done %s632, 64
        $region96: #{tpu_custom_call.1} parent=91 // pred_fallthru
          _
        // Predicated region
        $region97: #{tpu_custom_call.1} parent=91 // pred_check
          %p641 = pneg %p208
        $region98: #{tpu_custom_call.1} parent=91 // pred_check_branch
          %643 = sbr.rel (%p641) target = $region100
        $region99: #{tpu_custom_call.1} parent=91 // pred_region
          %645 = dma.done [#allocation9], 256
        $region100: #{tpu_custom_call.1} parent=91 // pred_fallthru
          _
        // Predicated region
        $region101: #{tpu_custom_call.1} parent=91 // pred_check
          %p646 = pneg %p250
        $region102: #{tpu_custom_call.1} parent=91 // pred_check_branch
          %648 = sbr.rel (%p646) target = $region104
        $region103: #{tpu_custom_call.1} parent=91 // pred_region
          %650 = dma.done [#allocation9], 256
        $region104: #{tpu_custom_call.1} parent=91 // pred_fallthru
          _
        // Predicated region
        $region105: #{tpu_custom_call.1} parent=91 // pred_check
          %p651 = pneg %p334
        $region106: #{tpu_custom_call.1} parent=91 // pred_check_branch
          %653 = sbr.rel (%p651) target = $region108
        $region107: #{tpu_custom_call.1} parent=91 // pred_region
          %655 = dma.done [#allocation12], 256
        $region108: #{tpu_custom_call.1} parent=91 // pred_fallthru
          _
        %p656 = scmp.lt.s32.totalorder %s46, 1
        %s657 = scalar_select %p656, %s46, 1
        %p658 = scmp.lt.s32.totalorder %s47, 0
        %s659 = scalar_select %p658, %s47, 0
        %s660 = sadd.s32 %s659, %s657
        %s661 = smul.addr %s660, 8
        %s662 = scalar_lea.vmem %s0, %s661
        %p663 = pneg %p77
        %p664 = pneg %p74
        %s665 = sand.u32 %s90, 1
        %s666 = scalar_lea.sflag [#allocation6], %s665
        %s667 = sand.u32 %s90, 1
        %s668 = smul.addr %s667, 4
        %s669 = scalar_lea.vmem [#allocation5], %s668
        %p670 = pneg %p103
        %p671 = pneg %p100
        %p672 = pneg %p124
        %p673 = pneg %p121
        %p674 = pneg %p145
        %p675 = pneg %p142
        %p676 = pneg %p166
        %p677 = pneg %p163
        %p678 = pneg %p187
        %p679 = pneg %p184
        %p680 = pneg %p208
        %p681 = pneg %p205
        %p682 = pneg %p229
        %p683 = pneg %p226
        %p684 = pneg %p250
        %p685 = pneg %p247
        %p686 = pneg %p271
        %p687 = pneg %p268
        %p688 = pneg %p292
        %p689 = pneg %p289
        %p690 = pneg %p313
        %p691 = pneg %p310
        %p692 = pneg %p334
        %p693 = pneg %p331
        %p694 = pneg %p355
        %p695 = pneg %p352
        %p696 = pneg %p376
        %p697 = pneg %p373
        %p698 = pneg %p397
        %p699 = pneg %p394
        %p700 = pneg %p418
        %p701 = pneg %p415
        %p702 = pneg %p439
        %p703 = pneg %p436
        %p704 = pneg %p467
        %p705 = pneg %p464
        %s706 = sand.u32 %s454, 1
        %s707 = scalar_lea.sflag [#allocation7], %s706
        %s708 = sand.u32 %s454, 1
        %s709 = smul.addr %s708, 8
        %s710 = scalar_lea.vmem [#allocation13], %s709
        %p711 = pneg %p495
        %p712 = pneg %p492
        %s713 = sand.u32 %s482, 1
        %s714 = scalar_lea.sflag [#allocation15], %s713
        %s715 = sand.u32 %s482, 1
        %s716 = smul.addr %s715, 8
        %s717 = scalar_lea.vmem [#allocation14], %s716
        %p718 = scmp.lt.s32.totalorder %s46, 1
        %s719 = scalar_select %p718, %s46, 1
        %p720 = scmp.lt.s32.totalorder %s47, 0
        %s721 = scalar_select %p720, %s47, 0
        %s722 = sadd.s32 %s721, %s719
        %s723 = smul.addr %s722, 8
        %s724 = scalar_lea.vmem %s0, %s723
        %p726 = scmp.eq.s32.totalorder %s47, 0
        // Predicated region
        $region109: #{tpu_custom_call.1} parent=91 // pred_check
          %p727 = pneg %p726
        $region110: #{tpu_custom_call.1} parent=91 // pred_check_branch
          %729 = sbr.rel (%p727) target = $region112
        $region111: #{tpu_custom_call.1} parent=91 // pred_region
          %v730 = vld [vmem:[%s635] sm:$0xf]
          %v731 = vld [vmem:[%s4] sm:$0xf]
          %v732 = vld [vmem:[%s4 + $0x4] sm:$0xf]
          %v733 = vld [vmem:[%s4 + $0x8] sm:$0xf]
          %v734 = vld [vmem:[%s4 + $0xc] sm:$0xf]
          %v735 = vld [vmem:[%s5] sm:$0x1]
          %v737 = vperm.slane %v735, 0
          %v743 = vunpack.c.l.b16 %v731
          %v744 = vunpack.c.l.b16 %v732
          %v745 = vunpack.c.l.b16 %v733
          %v746 = vunpack.c.l.b16 %v734
          %v747 = vpack.c.b16 %v744, %v743
          %v748 = vpack.c.b16 %v746, %v745
          %vm751 = vcmask 261120
          %v753 = vsel %vm751, %v730, 0
          %755 = vmatpush.bf16.msra.mxu0 0
          %756 = vmatpush.bf16.msra.mxu0 0
          %757 = vmatpush.bf16.msra.mxu0 0
          %758 = vmatpush.bf16.msra.mxu0 0
          %759 = vmatpush.bf16.msra.mxu0 0
          %760 = vmatpush.bf16.msra.mxu0 0
          %761 = vmatpush.bf16.msra.mxu0 %v748
          %762 = vmatpush.bf16.msra.mxu0 %v747
          %763 = vmatmul.bf16.gmra.mxu0 %v753
          %v764 = vpop.f32.mrf.mxu0
          %v765 = vadd.f32 %v737, %v764
          %v766 = vpop.f32.mrf.mxu0
          %767 = vdwg.mxu0
          %v768 = vld [vmem:[#allocation8] sm:$0xf]
          %v769 = vld [vmem:[#allocation8 + $0x4] sm:$0xf]
          %v770 = vld [vmem:[#allocation8 + $0x8] sm:$0xf]
          %v771 = vld [vmem:[#allocation8 + $0xc] sm:$0xf]
          %v772 = vld [vmem:[%s7] sm:$0x1]
          %v774 = vperm.slane %v772, 0
          %v780 = vunpack.c.l.b16 %v768
          %v781 = vunpack.c.l.b16 %v769
          %v782 = vunpack.c.l.b16 %v770
          %v783 = vunpack.c.l.b16 %v771
          %v784 = vpack.c.b16 %v781, %v780
          %v785 = vpack.c.b16 %v783, %v782
          %788 = vmatpush.bf16.msra.mxu0 0
          %789 = vmatpush.bf16.msra.mxu0 0
          %790 = vmatpush.bf16.msra.mxu0 0
          %791 = vmatpush.bf16.msra.mxu0 0
          %792 = vmatpush.bf16.msra.mxu0 0
          %793 = vmatpush.bf16.msra.mxu0 0
          %794 = vmatpush.bf16.msra.mxu0 %v785
          %795 = vmatpush.bf16.msra.mxu0 %v784
          %796 = vmatmul.bf16.gmra.mxu0 %v753
          %v797 = vpop.f32.mrf.mxu0
          %v798 = vadd.f32 %v774, %v797
          %v799 = vpop.f32.mrf.mxu0
          %800 = vdwg.mxu0
          %v801 = vpack.c.bf16 %v765, %v765
          %vm802 = vcmask 257024
          %803 = vst.msk [vmem:[#allocation2] sm:$0xf] %vm802, %v801
          %v804 = vpack.c.bf16 %v798, %v798
          %805 = vst.msk [vmem:[#allocation3] sm:$0xf] %vm802, %v804
        $region112: #{tpu_custom_call.1} parent=91 // pred_fallthru
          _
        %v806 = vld [vmem:[%s724] sm:$0xff]
        %v807 = vpack.c.bf16 %v806, %v806
        %v808 = vld [vmem:[%s2] sm:$0xf]
        %v809 = vld [vmem:[%s2 + $0x4] sm:$0xf]
        %v810 = vld [vmem:[%s2 + $0x8] sm:$0xf]
        %v811 = vld [vmem:[%s2 + $0xc] sm:$0xf]
        %v812 = vld [vmem:[%s3] sm:$0x1]
        %v814 = vperm.slane %v812, 0
        %v820 = vunpack.c.l.b16 %v808
        %v821 = vunpack.c.l.b16 %v809
        %v822 = vunpack.c.l.b16 %v810
        %v823 = vunpack.c.l.b16 %v811
        %v824 = vpack.c.b16 %v821, %v820
        %v825 = vpack.c.b16 %v823, %v822
        %vm828 = vcmask 261120
        %v830 = vsel %vm828, %v807, 0
        %832 = vmatpush.bf16.msra.mxu0 0
        %833 = vmatpush.bf16.msra.mxu0 0
        %834 = vmatpush.bf16.msra.mxu0 0
        %835 = vmatpush.bf16.msra.mxu0 0
        %836 = vmatpush.bf16.msra.mxu0 0
        %837 = vmatpush.bf16.msra.mxu0 0
        %838 = vmatpush.bf16.msra.mxu0 %v825
        %839 = vmatpush.bf16.msra.mxu0 %v824
        %840 = vmatmul.bf16.gmra.mxu0 %v830
        %v841 = vpop.f32.mrf.mxu0
        %v842 = vadd.f32 %v814, %v841
        %v843 = vpop.f32.mrf.mxu0
        %844 = vdwg.mxu0
        %v845 = vpack.c.bf16 %v842, %v842
        %v846 = vld [vmem:[#allocation2] sm:$0xf]
        %v847 = vld [vmem:[#allocation3] sm:$0xf]
        %vm848 = vcmask 64512
        %v850 = vsel %vm848, %v845, 0
        %v853 = vsel %vm848, %v846, 0
        %855 = vmatpush.bf16.xpose.msra.mxu0 0
        %856 = vmatpush.bf16.xpose.msra.mxu0 0
        %857 = vmatpush.bf16.xpose.msra.mxu0 0
        %858 = vmatpush.bf16.xpose.msra.mxu0 0
        %859 = vmatpush.bf16.xpose.msra.mxu0 0
        %860 = vmatpush.bf16.xpose.msra.mxu0 0
        %861 = vmatpush.bf16.xpose.msra.mxu0 0
        %862 = vmatpush.bf16.xpose.msra.mxu0 %v853
        %863 = vmatmul.bf16.gmra.mxu0 %v850
        %v864 = vpop.f32.mrf.mxu0
        %v865 = vadd.f32 0.0, %v864
        %v866 = vpop.f32.mrf.mxu0
        %867 = vdwg.mxu0
        %v868 = vsel %vm848, %v865, -inf
        %869 = vmax.xlane.f32.xlu0 %v868
        %v870 = vpop.xlane.xlu0 %869
        %v871 = vsub.f32 %v865, %v870
        %v872 = vmul.f32 %v871, 1.442695
        %v873 = vpow.pop %v872
        %v874 = vsel %vm848, %v873, 0.0
        %875 = vadd.xlane.f32.xlu0 %v874
        %v876 = vpop.xlane.xlu0 %875
        %v877 = vrcp.pop %v876
        %v878 = vpack.c.bf16 %v873, %v873
        %v880 = vsel %vm848, %v878, 0
        %vm882 = vcmask 1043456
        %v884 = vsel %vm882, %v847, 0
        %886 = vmatpush.bf16.msra.mxu0 0
        %887 = vmatpush.bf16.msra.mxu0 0
        %888 = vmatpush.bf16.msra.mxu0 0
        %889 = vmatpush.bf16.msra.mxu0 0
        %890 = vmatpush.bf16.msra.mxu0 0
        %891 = vmatpush.bf16.msra.mxu0 0
        %892 = vmatpush.bf16.msra.mxu0 0
        %893 = vmatpush.bf16.msra.mxu0 %v884
        %894 = vmatmul.bf16.gmra.mxu0 %v880
        %v895 = vpop.f32.mrf.mxu0
        %v896 = vadd.f32 0.0, %v895
        %v897 = vpop.f32.mrf.mxu0
        %898 = vdwg.mxu0
        %v899 = vmul.f32 %v896, %v877
        %v900 = vpack.c.bf16 %v899, %v899
        %vm901 = vcmask 60416
        %902 = vst.msk [vmem:[#allocation4] sm:$0xf] %vm901, %v900
        %v903 = vld [vmem:[#allocation2] sm:$0xf]
        %v904 = vld [vmem:[#allocation3] sm:$0xf]
        %906 = vrot.lane.b32.xlu0 %v845, 120
        %v907 = vpop.permute.xlu0 %906
        %v909 = vunpack.c.l.b16 %v903
        %v910 = vpack.c.b16 %v909, %v909
        %911 = vrot.lane.b32.xlu0 %v910, 120
        %v912 = vpop.permute.xlu0 %911
        %v914 = vsel %vm848, %v907, 0
        %v917 = vsel %vm848, %v912, 0
        %919 = vmatpush.bf16.xpose.msra.mxu0 0
        %920 = vmatpush.bf16.xpose.msra.mxu0 0
        %921 = vmatpush.bf16.xpose.msra.mxu0 0
        %922 = vmatpush.bf16.xpose.msra.mxu0 0
        %923 = vmatpush.bf16.xpose.msra.mxu0 0
        %924 = vmatpush.bf16.xpose.msra.mxu0 0
        %925 = vmatpush.bf16.xpose.msra.mxu0 0
        %926 = vmatpush.bf16.xpose.msra.mxu0 %v917
        %927 = vmatmul.bf16.gmra.mxu0 %v914
        %v928 = vpop.f32.mrf.mxu0
        %v929 = vadd.f32 0.0, %v928
        %v930 = vpop.f32.mrf.mxu0
        %931 = vdwg.mxu0
        %v932 = vsel %vm848, %v929, -inf
        %933 = vmax.xlane.f32.xlu0 %v932
        %v934 = vpop.xlane.xlu0 %933
        %v935 = vsub.f32 %v929, %v934
        %v936 = vmul.f32 %v935, 1.442695
        %v937 = vpow.pop %v936
        %v938 = vsel %vm848, %v937, 0.0
        %939 = vadd.xlane.f32.xlu0 %v938
        %v940 = vpop.xlane.xlu0 %939
        %v941 = vrcp.pop %v940
        %v942 = vpack.c.bf16 %v937, %v937
        %v944 = vunpack.c.l.b16 %v904
        %v945 = vpack.c.b16 %v944, %v944
        %946 = vrot.lane.b32.xlu0 %v945, 120
        %v947 = vpop.permute.xlu0 %946
        %v949 = vsel %vm848, %v942, 0
        %v952 = vsel %vm882, %v947, 0
        %954 = vmatpush.bf16.msra.mxu0 0
        %955 = vmatpush.bf16.msra.mxu0 0
        %956 = vmatpush.bf16.msra.mxu0 0
        %957 = vmatpush.bf16.msra.mxu0 0
        %958 = vmatpush.bf16.msra.mxu0 0
        %959 = vmatpush.bf16.msra.mxu0 0
        %960 = vmatpush.bf16.msra.mxu0 0
        %961 = vmatpush.bf16.msra.mxu0 %v952
        %962 = vmatmul.bf16.gmra.mxu0 %v949
        %v963 = vpop.f32.mrf.mxu0
        %v964 = vadd.f32 0.0, %v963
        %v965 = vpop.f32.mrf.mxu0
        %966 = vdwg.mxu0
        %v967 = vmul.f32 %v964, %v941
        %v968 = vpack.c.bf16 %v967, %v967
        %970 = vrot.lane.b32.xlu0 %v968, 8
        %v971 = vpop.permute.xlu0 %970
        %vm973 = vcmask 126016
        %974 = vst.msk [vmem:[#allocation4] sm:$0xf] %vm973, %v971
        %v975 = vld [vmem:[#allocation2] sm:$0xf]
        %v976 = vld [vmem:[#allocation3] sm:$0xf]
        %977 = vrot.lane.b32.xlu0 %v845, 112
        %v978 = vpop.permute.xlu0 %977
        %v980 = vunpack.c.l.b16 %v975
        %v981 = vpack.c.b16 %v980, %v980
        %982 = vrot.lane.b32.xlu0 %v981, 112
        %v983 = vpop.permute.xlu0 %982
        %v985 = vsel %vm848, %v978, 0
        %v988 = vsel %vm848, %v983, 0
        %990 = vmatpush.bf16.xpose.msra.mxu0 0
        %991 = vmatpush.bf16.xpose.msra.mxu0 0
        %992 = vmatpush.bf16.xpose.msra.mxu0 0
        %993 = vmatpush.bf16.xpose.msra.mxu0 0
        %994 = vmatpush.bf16.xpose.msra.mxu0 0
        %995 = vmatpush.bf16.xpose.msra.mxu0 0
        %996 = vmatpush.bf16.xpose.msra.mxu0 0
        %997 = vmatpush.bf16.xpose.msra.mxu0 %v988
        %998 = vmatmul.bf16.gmra.mxu0 %v985
        %v999 = vpop.f32.mrf.mxu0
        %v1000 = vadd.f32 0.0, %v999
        %v1001 = vpop.f32.mrf.mxu0
        %1002 = vdwg.mxu0
        %v1003 = vsel %vm848, %v1000, -inf
        %1004 = vmax.xlane.f32.xlu0 %v1003
        %v1005 = vpop.xlane.xlu0 %1004
        %v1006 = vsub.f32 %v1000, %v1005
        %v1007 = vmul.f32 %v1006, 1.442695
        %v1008 = vpow.pop %v1007
        %v1009 = vsel %vm848, %v1008, 0.0
        %1010 = vadd.xlane.f32.xlu0 %v1009
        %v1011 = vpop.xlane.xlu0 %1010
        %v1012 = vrcp.pop %v1011
        %v1013 = vpack.c.bf16 %v1008, %v1008
        %v1015 = vunpack.c.l.b16 %v976
        %v1016 = vpack.c.b16 %v1015, %v1015
        %1017 = vrot.lane.b32.xlu0 %v1016, 112
        %v1018 = vpop.permute.xlu0 %1017
        %v1020 = vsel %vm848, %v1013, 0
        %v1023 = vsel %vm882, %v1018, 0
        %1025 = vmatpush.bf16.msra.mxu0 0
        %1026 = vmatpush.bf16.msra.mxu0 0
        %1027 = vmatpush.bf16.msra.mxu0 0
        %1028 = vmatpush.bf16.msra.mxu0 0
        %1029 = vmatpush.bf16.msra.mxu0 0
        %1030 = vmatpush.bf16.msra.mxu0 0
        %1031 = vmatpush.bf16.msra.mxu0 0
        %1032 = vmatpush.bf16.msra.mxu0 %v1023
        %1033 = vmatmul.bf16.gmra.mxu0 %v1020
        %v1034 = vpop.f32.mrf.mxu0
        %v1035 = vadd.f32 0.0, %v1034
        %v1036 = vpop.f32.mrf.mxu0
        %1037 = vdwg.mxu0
        %v1038 = vmul.f32 %v1035, %v1012
        %v1039 = vpack.c.bf16 %v1038, %v1038
        %1041 = vrot.lane.b32.xlu0 %v1039, 16
        %v1042 = vpop.permute.xlu0 %1041
        %vm1044 = vcmask 191616
        %1045 = vst.msk [vmem:[#allocation4] sm:$0xf] %vm1044, %v1042
        %v1046 = vld [vmem:[#allocation2] sm:$0xf]
        %v1047 = vld [vmem:[#allocation3] sm:$0xf]
        %1048 = vrot.lane.b32.xlu0 %v845, 104
        %v1049 = vpop.permute.xlu0 %1048
        %v1051 = vunpack.c.l.b16 %v1046
        %v1052 = vpack.c.b16 %v1051, %v1051
        %1053 = vrot.lane.b32.xlu0 %v1052, 104
        %v1054 = vpop.permute.xlu0 %1053
        %v1056 = vsel %vm848, %v1049, 0
        %v1059 = vsel %vm848, %v1054, 0
        %1061 = vmatpush.bf16.xpose.msra.mxu0 0
        %1062 = vmatpush.bf16.xpose.msra.mxu0 0
        %1063 = vmatpush.bf16.xpose.msra.mxu0 0
        %1064 = vmatpush.bf16.xpose.msra.mxu0 0
        %1065 = vmatpush.bf16.xpose.msra.mxu0 0
        %1066 = vmatpush.bf16.xpose.msra.mxu0 0
        %1067 = vmatpush.bf16.xpose.msra.mxu0 0
        %1068 = vmatpush.bf16.xpose.msra.mxu0 %v1059
        %1069 = vmatmul.bf16.gmra.mxu0 %v1056
        %v1070 = vpop.f32.mrf.mxu0
        %v1071 = vadd.f32 0.0, %v1070
        %v1072 = vpop.f32.mrf.mxu0
        %1073 = vdwg.mxu0
        %v1074 = vsel %vm848, %v1071, -inf
        %1075 = vmax.xlane.f32.xlu0 %v1074
        %v1076 = vpop.xlane.xlu0 %1075
        %v1077 = vsub.f32 %v1071, %v1076
        %v1078 = vmul.f32 %v1077, 1.442695
        %v1079 = vpow.pop %v1078
        %v1080 = vsel %vm848, %v1079, 0.0
        %1081 = vadd.xlane.f32.xlu0 %v1080
        %v1082 = vpop.xlane.xlu0 %1081
        %v1083 = vrcp.pop %v1082
        %v1084 = vpack.c.bf16 %v1079, %v1079
        %v1086 = vunpack.c.l.b16 %v1047
        %v1087 = vpack.c.b16 %v1086, %v1086
        %1088 = vrot.lane.b32.xlu0 %v1087, 104
        %v1089 = vpop.permute.xlu0 %1088
        %v1091 = vsel %vm848, %v1084, 0
        %v1094 = vsel %vm882, %v1089, 0
        %1096 = vmatpush.bf16.msra.mxu0 0
        %1097 = vmatpush.bf16.msra.mxu0 0
        %1098 = vmatpush.bf16.msra.mxu0 0
        %1099 = vmatpush.bf16.msra.mxu0 0
        %1100 = vmatpush.bf16.msra.mxu0 0
        %1101 = vmatpush.bf16.msra.mxu0 0
        %1102 = vmatpush.bf16.msra.mxu0 0
        %1103 = vmatpush.bf16.msra.mxu0 %v1094
        %1104 = vmatmul.bf16.gmra.mxu0 %v1091
        %v1105 = vpop.f32.mrf.mxu0
        %v1106 = vadd.f32 0.0, %v1105
        %v1107 = vpop.f32.mrf.mxu0
        %1108 = vdwg.mxu0
        %v1109 = vmul.f32 %v1106, %v1083
        %v1110 = vpack.c.bf16 %v1109, %v1109
        %1112 = vrot.lane.b32.xlu0 %v1110, 24
        %v1113 = vpop.permute.xlu0 %1112
        %vm1115 = vcmask 257216
        %1116 = vst.msk [vmem:[#allocation4] sm:$0xf] %vm1115, %v1113
        %v1117 = vld [vmem:[#allocation4] sm:$0xf]
        %v1118 = vld [vmem:[#allocation10] sm:$0xf]
        %v1119 = vld [vmem:[#allocation10 + $0x4] sm:$0xf]
        %v1120 = vld [vmem:[#allocation10 + $0x8] sm:$0xf]
        %v1121 = vld [vmem:[#allocation10 + $0xc] sm:$0xf]
        %v1122 = vld [vmem:[%s9] sm:$0x1]
        %v1124 = vperm.slane %v1122, 0
        %v1130 = vunpack.c.l.b16 %v1118
        %v1131 = vunpack.c.l.b16 %v1119
        %v1132 = vunpack.c.l.b16 %v1120
        %v1133 = vunpack.c.l.b16 %v1121
        %v1134 = vpack.c.b16 %v1131, %v1130
        %v1135 = vpack.c.b16 %v1133, %v1132
        %v1139 = vsel %vm828, %v1117, 0
        %1141 = vmatpush.bf16.msra.mxu0 0
        %1142 = vmatpush.bf16.msra.mxu0 0
        %1143 = vmatpush.bf16.msra.mxu0 0
        %1144 = vmatpush.bf16.msra.mxu0 0
        %1145 = vmatpush.bf16.msra.mxu0 0
        %1146 = vmatpush.bf16.msra.mxu0 0
        %1147 = vmatpush.bf16.msra.mxu0 %v1135
        %1148 = vmatpush.bf16.msra.mxu0 %v1134
        %1149 = vmatmul.bf16.gmra.mxu0 %v1139
        %v1150 = vpop.f32.mrf.mxu0
        %v1151 = vadd.f32 %v1124, %v1150
        %v1152 = vpop.f32.mrf.mxu0
        %1153 = vdwg.mxu0
        %v1154 = vadd.f32 %v806, %v1151
        %v1155 = vsel %vm828, %v1154, 0.0
        %1156 = vadd.xlane.f32.xlu0 %v1155
        %v1157 = vpop.xlane.xlu0 %1156
        %v1158 = vrcp.pop 32.0
        %v1159 = vmul.f32 32.0, %v1158
        %v1160 = vsub.f32 1.0, %v1159
        %v1161 = vmul.f32 %v1158, %v1160
        %v1162 = vadd.f32 %v1158, %v1161
        %vm1163 = vweird.f32 %v1158
        %v1164 = vsel %vm1163, %v1158, %v1162
        %v1165 = vmul.f32 %v1157, %v1164
        %v1166 = vsub.f32 %v1154, %v1165
        %v1167 = vmul.f32 %v1166, %v1166
        %v1168 = vsel %vm828, %v1167, 0.0
        %1169 = vadd.xlane.f32.xlu0 %v1168
        %v1170 = vpop.xlane.xlu0 %1169
        %v1171 = vmul.f32 %v1170, %v1164
        %v1172 = vadd.f32 %v1171, 1e-05
        %v1173 = vrsqrt.pop %v1172
        %v1174 = vmul.f32 %v1173, %v1172
        %v1175 = vmul.f32 %v1174, %v1173
        %v1176 = vmul.f32 0.5, %v1175
        %v1177 = vsub.f32 1.5, %v1176
        %v1178 = vmul.f32 %v1173, %v1177
        %vm1179 = vweird.f32 %v1172
        %vm1180 = vweird.f32 %v1173
        %vm1181 = vmor %vm1179, %vm1180
        %v1182 = vsel %vm1181, %v1173, %v1178
        %v1183 = vmul.f32 %v1166, %v1182
        %v1184 = vld [vmem:[%s10] sm:$0x1]
        %v1186 = vperm.slane %v1184, 0
        %v1188 = vmul.f32 %v1183, %v1186
        %v1189 = vld [vmem:[%s11] sm:$0x1]
        %v1191 = vperm.slane %v1189, 0
        %v1193 = vadd.f32 %v1188, %v1191
        %v1194 = vpack.c.bf16 %v1193, %v1193
        %v1195 = vld [vmem:[#allocation11] sm:$0xf]
        %v1196 = vld [vmem:[#allocation11 + $0x4] sm:$0xf]
        %v1197 = vld [vmem:[#allocation11 + $0x8] sm:$0xf]
        %v1198 = vld [vmem:[#allocation11 + $0xc] sm:$0xf]
        %v1199 = vld [vmem:[%s13] sm:$0x1]
        %v1201 = vperm.slane %v1199, 0
        %v1207 = vunpack.c.l.b16 %v1195
        %v1208 = vunpack.c.l.b16 %v1196
        %v1209 = vunpack.c.l.b16 %v1197
        %v1210 = vunpack.c.l.b16 %v1198
        %v1211 = vpack.c.b16 %v1208, %v1207
        %v1212 = vpack.c.b16 %v1210, %v1209
        %v1216 = vsel %vm828, %v1194, 0
        %1218 = vmatpush.bf16.msra.mxu0 0
        %1219 = vmatpush.bf16.msra.mxu0 0
        %1220 = vmatpush.bf16.msra.mxu0 0
        %1221 = vmatpush.bf16.msra.mxu0 0
        %1222 = vmatpush.bf16.msra.mxu0 0
        %1223 = vmatpush.bf16.msra.mxu0 0
        %1224 = vmatpush.bf16.msra.mxu0 %v1212
        %1225 = vmatpush.bf16.msra.mxu0 %v1211
        %1226 = vmatmul.bf16.gmra.mxu0 %v1216
        %v1227 = vpop.f32.mrf.mxu0
        %v1228 = vadd.f32 %v1201, %v1227
        %v1229 = vpop.f32.mrf.mxu0
        %1230 = vdwg.mxu0
        %v1231 = vmax.f32 %v1228, 0.0
        %v1232 = vpack.c.bf16 %v1231, %v1231
        %v1233 = vld [vmem:[%s14] sm:$0xf]
        %v1234 = vld [vmem:[%s14 + $0x4] sm:$0xf]
        %v1235 = vld [vmem:[%s14 + $0x8] sm:$0xf]
        %v1236 = vld [vmem:[%s14 + $0xc] sm:$0xf]
        %v1237 = vld [vmem:[%s14 + $0x10] sm:$0xf]
        %v1238 = vld [vmem:[%s14 + $0x14] sm:$0xf]
        %v1239 = vld [vmem:[%s14 + $0x18] sm:$0xf]
        %v1240 = vld [vmem:[%s14 + $0x1c] sm:$0xf]
        %v1241 = vld [vmem:[%s15] sm:$0x1]
        %v1243 = vperm.slane %v1241, 0
        %v1253 = vunpack.c.l.b16 %v1233
        %v1254 = vunpack.c.l.b16 %v1234
        %v1255 = vunpack.c.l.b16 %v1235
        %v1256 = vunpack.c.l.b16 %v1236
        %v1257 = vunpack.c.l.b16 %v1237
        %v1258 = vunpack.c.l.b16 %v1238
        %v1259 = vunpack.c.l.b16 %v1239
        %v1260 = vunpack.c.l.b16 %v1240
        %v1261 = vpack.c.b16 %v1254, %v1253
        %v1262 = vpack.c.b16 %v1256, %v1255
        %v1263 = vpack.c.b16 %v1258, %v1257
        %v1264 = vpack.c.b16 %v1260, %v1259
        %vm1269 = vcmask 523264
        %v1271 = vsel %vm1269, %v1232, 0
        %1273 = vmatpush.bf16.msra.mxu0 0
        %1274 = vmatpush.bf16.msra.mxu0 0
        %1275 = vmatpush.bf16.msra.mxu0 0
        %1276 = vmatpush.bf16.msra.mxu0 0
        %1277 = vmatpush.bf16.msra.mxu0 %v1264
        %1278 = vmatpush.bf16.msra.mxu0 %v1263
        %1279 = vmatpush.bf16.msra.mxu0 %v1262
        %1280 = vmatpush.bf16.msra.mxu0 %v1261
        %1281 = vmatmul.bf16.gmra.mxu0 %v1271
        %v1282 = vpop.f32.mrf.mxu0
        %v1283 = vadd.f32 %v1243, %v1282
        %v1284 = vpop.f32.mrf.mxu0
        %1285 = vdwg.mxu0
        %1286 = vst.msk [vmem:[%s717] sm:$0xff] %vm828, %v1283
        %v1287 = vadd.f32 %v1193, %v1283
        %v1288 = vsel %vm828, %v1287, 0.0
        %1289 = vadd.xlane.f32.xlu0 %v1288
        %v1290 = vpop.xlane.xlu0 %1289
        %v1291 = vmul.f32 %v1290, %v1164
        %v1292 = vsub.f32 %v1287, %v1291
        %v1293 = vmul.f32 %v1292, %v1292
        %v1294 = vsel %vm828, %v1293, 0.0
        %1295 = vadd.xlane.f32.xlu0 %v1294
        %v1296 = vpop.xlane.xlu0 %1295
        %v1297 = vmul.f32 %v1296, %v1164
        %v1298 = vadd.f32 %v1297, 1e-05
        %v1299 = vrsqrt.pop %v1298
        %v1300 = vmul.f32 %v1299, %v1298
        %v1301 = vmul.f32 %v1300, %v1299
        %v1302 = vmul.f32 0.5, %v1301
        %v1303 = vsub.f32 1.5, %v1302
        %v1304 = vmul.f32 %v1299, %v1303
        %vm1305 = vweird.f32 %v1298
        %vm1306 = vweird.f32 %v1299
        %vm1307 = vmor %vm1305, %vm1306
        %v1308 = vsel %vm1307, %v1299, %v1304
        %v1309 = vmul.f32 %v1292, %v1308
        %v1310 = vld [vmem:[%s16] sm:$0x1]
        %v1312 = vperm.slane %v1310, 0
        %v1314 = vmul.f32 %v1309, %v1312
        %v1315 = vld [vmem:[%s17] sm:$0x1]
        %v1317 = vperm.slane %v1315, 0
        %v1319 = vadd.f32 %v1314, %v1317
        %1320 = vst.msk [vmem:[%s710] sm:$0xff] %vm828, %v1319
        %s1321 = sand.u32 %s454, 1
        %s1322 = scalar_lea.sflag [#allocation7], %s1321
        %s1323 = sand.u32 %s454, 1
        %s1324 = smul.addr %s1323, 8
        %s1325 = scalar_lea.vmem [#allocation13], %s1324
        %s1326 = sand.u32 %s482, 1
        %s1327 = scalar_lea.sflag [#allocation15], %s1326
        %s1328 = sand.u32 %s482, 1
        %s1329 = smul.addr %s1328, 8
        %s1330 = scalar_lea.vmem [#allocation14], %s1329
        // Predicated region
        $region113: #{tpu_custom_call.1} parent=91 // pred_check
          %p1331 = pneg %p464
        $region114: #{tpu_custom_call.1} parent=91 // pred_check_branch
          %1333 = sbr.rel (%p1331) target = $region116
        $region115: #{tpu_custom_call.1} parent=91 // pred_region
          %1335 = vsyncadd %s1322, 0
          %s1336 = sadd.s32 %s47, %s46
          %s1337 = smul.addr %s1336, 8
          %s1338 = scalar_lea.hbm %s18, %s1337
          %s1340 = sshll.u32 %s1325, 4
          %s1341 = int_to_ptr.vmem [resolvable:$true] %s1340
          %s1342 = sshll.u32 %s1338, 4
          %s1343 = int_to_ptr.hbm [resolvable:$true] %s1342
          %1345 = dma.vmem_to_hbm [thread:$0]  %s1341, 128, %s1343, %s1322
        $region116: #{tpu_custom_call.1} parent=91 // pred_fallthru
          _
        // Predicated region
        $region117: #{tpu_custom_call.1} parent=91 // pred_check
          %p1346 = pneg %p492
        $region118: #{tpu_custom_call.1} parent=91 // pred_check_branch
          %1348 = sbr.rel (%p1346) target = $region120
        $region119: #{tpu_custom_call.1} parent=91 // pred_region
          %1350 = vsyncadd %s1327, 0
          %s1351 = sadd.s32 %s47, %s46
          %s1352 = smul.addr %s1351, 8
          %s1353 = scalar_lea.hbm %s19, %s1352
          %s1355 = sshll.u32 %s1330, 4
          %s1356 = int_to_ptr.vmem [resolvable:$true] %s1355
          %s1357 = sshll.u32 %s1353, 4
          %s1358 = int_to_ptr.hbm [resolvable:$true] %s1357
          %1360 = dma.vmem_to_hbm [thread:$0]  %s1356, 128, %s1358, %s1327
        $region120: #{tpu_custom_call.1} parent=91 // pred_fallthru
          _
      $region92: #{tpu_custom_call.1} parent=5 // pred_fallthru
        _
      %p1361 = scmp.le.s32.totalorder 2, %s37
      // Predicated region
      $region121: #{tpu_custom_call.1} parent=5 // pred_check
        %p1362 = pneg %p1361
      $region122: #{tpu_custom_call.1} parent=5 // pred_check_branch
        %1364 = sbr.rel (%p1362) target = $region124
      $region123: #{tpu_custom_call.1} parent=5 // pred_region
        %s1365 = ssub.s32 %s37, 2
        // Predicated region
        $region125: #{tpu_custom_call.1} parent=123 // pred_check
          %p1366 = pneg %p470
        $region126: #{tpu_custom_call.1} parent=123 // pred_check_branch
          %1368 = sbr.rel (%p1366) target = $region128
        $region127: #{tpu_custom_call.1} parent=123 // pred_region
          %s1369 = sand.u32 %s455, 1
          %s1370 = scalar_lea.sflag [#allocation7], %s1369
          %s1371 = sand.u32 %s455, 1
          %s1372 = smul.addr %s1371, 8
          %s1373 = scalar_lea.vmem [#allocation13], %s1372
          %1375 = dma.done %s1370, 128
        $region128: #{tpu_custom_call.1} parent=123 // pred_fallthru
          _
        // Predicated region
        $region129: #{tpu_custom_call.1} parent=123 // pred_check
          %p1376 = pneg %p498
        $region130: #{tpu_custom_call.1} parent=123 // pred_check_branch
          %1378 = sbr.rel (%p1376) target = $region132
        $region131: #{tpu_custom_call.1} parent=123 // pred_region
          %s1379 = sand.u32 %s483, 1
          %s1380 = scalar_lea.sflag [#allocation15], %s1379
          %s1381 = sand.u32 %s483, 1
          %s1382 = smul.addr %s1381, 8
          %s1383 = scalar_lea.vmem [#allocation14], %s1382
          %1385 = dma.done %s1380, 128
        $region132: #{tpu_custom_call.1} parent=123 // pred_fallthru
          _
      $region124: #{tpu_custom_call.1} parent=5 // pred_fallthru
        _
    $region6: #{tpu_custom_call.1} parent=1 // loop_footer
      %s41 = sadd.s32 1, %s37
    $region7: #{tpu_custom_call.1} parent=1 // loop_footer_branch
      %36 = sbr.rel target = $region3
    $region8: #{tpu_custom_call.1} parent=1 // loop_exit
      _
    %1386 = vsyncpa [#allocation6], 1
    %s1387 = scalar_lea.sflag [#allocation6], 1
    %1388 = vsyncpa %s1387, 1
    %1389 = vsyncpa [#allocation9], 1
    %1390 = vsyncpa [#allocation12], 1
    %1391 = vsyncpa [#allocation7], 1
    %s1392 = scalar_lea.sflag [#allocation7], 1
    %1393 = vsyncpa %s1392, 1
    %1394 = vsyncpa [#allocation15], 1
    %s1395 = scalar_lea.sflag [#allocation15], 1
    %1396 = vsyncpa %s1395, 1

</llo_original>
